<compile_context>
chip_gen: v5e
topology: v5e:2x2
jax: 0.10.0
libtpu: 0.0.40
codegen_flags: <defaults>
</compile_context>

<pallas_src>
import jax
import jax.numpy as jnp
from jax import lax
from jax.experimental import pallas as pl
from jax.experimental.pallas import tpu as pltpu


PATCH = 8  # patch_size hard-coded in the reference module's forward()


# ----------------------------- fused forward kernel -----------------------------
def _make_kernel(B, Hs, Ws, rnn_hidden):
    n = Hs // PATCH          # patch blocks per spatial dim
    L = n * n                # LSTM sequence length
    G = 4 * rnn_hidden       # LSTM gate width, PyTorch order (i, f, g, o)
    HW = Hs * Ws

    def sigmoid(z):
        return 1.0 / (1.0 + jnp.exp(-z))

    def kernel(x_ref, cw_ref, gamma_ref, beta_ref,
               win_ref, bin_ref, whh_ref, wout_ref, bout_ref, o_ref):
        # x_ref   : (3, B, (Hs+2)*Ws + 2) f32 VMEM  channel-major, row-padded,
        #            flattened, +1 halo element each side
        # cw_ref  : (27,) f32 SMEM   flattened Conv2d(3,1,3,3) weights
        # gamma/beta : (1,) f32 SMEM BatchNorm2d(1) affine params
        # win_ref : (PATCH*Ws, n*G) f32 VMEM  W_ih with the 8x8 unfold folded in
        # bin_ref : (1, n*G) f32 VMEM  (b_ih + b_hh) tiled n times
        # whh_ref : (rnn_hidden, G), wout/bout: (rnn_hidden, C), (1, C) f32 VMEM
        # o_ref   : (B, C) f32 VMEM
        f32 = jnp.float32

        # ---- conv3x3 (padding=1, bias=False), lane-dense (B, Hs*Ws) accumulator
        xv = x_ref[...]
        col = lax.broadcasted_iota(jnp.int32, (B, HW), 1) % Ws
        acc = jnp.zeros((B, HW), f32)
        for ow in (-1, 0, 1):
            part = jnp.zeros((B, HW), f32)
            for oh in (-1, 0, 1):
                s = 1 + (oh + 1) * Ws + ow            # static lane-window start
                sl = xv[:, :, s:s + HW]               # one shift, all 3 channels
                for ch in range(3):
                    part = part + sl[ch] * cw_ref[ch * 9 + (oh + 1) * 3 + (ow + 1)]
            if ow:                                    # zero the wrapped column
                part = jnp.where(col == (0 if ow == -1 else Ws - 1), 0.0, part)
            acc = acc + part

        # ---- BatchNorm2d(1), training-mode batch statistics (one pass) + ReLU
        cnt = jnp.float32(B * HW)
        s1 = jnp.sum(acc, keepdims=True)              # (1, 1)
        s2 = jnp.sum(acc * acc, keepdims=True)        # (1, 1)
        mean = s1 / cnt
        var = s2 / cnt - mean * mean
        scale = lax.rsqrt(var + 1e-5) * gamma_ref[0]
        feat = jnp.maximum((acc - mean) * scale + beta_ref[0], 0.0)   # (B, HW)

        # ---- LSTM input projection, hoisted out of the recurrence ----
        # xpre[r][:, c*G:(c+1)*G] == x_{t=r*n+c} @ W_ih^T + (b_ih + b_hh)
        wmat = win_ref[...]
        bvec = bin_ref[...]
        xpre = []
        for r in range(n):
            fr = feat[:, r * PATCH * Ws:(r + 1) * PATCH * Ws]   # (B, PATCH*Ws)
            xpre.append(jnp.dot(fr, wmat, preferred_element_type=f32) + bvec)

        # ---- LSTM recurrence: fully unrolled, h/c carried in vregs ----
        whh = whh_ref[...]
        h = jnp.zeros((B, rnn_hidden), f32)
        c = jnp.zeros((B, rnn_hidden), f32)
        for t in range(L):
            gates = xpre[t // n][:, (t % n) * G:(t % n + 1) * G]
            if t > 0:                                 # h_0 == 0 -> skip h @ W_hh
                gates = gates + jnp.dot(h, whh, preferred_element_type=f32)
            i_g = sigmoid(gates[:, 0 * rnn_hidden:1 * rnn_hidden])
            f_g = sigmoid(gates[:, 1 * rnn_hidden:2 * rnn_hidden])
            g_g = jnp.tanh(gates[:, 2 * rnn_hidden:3 * rnn_hidden])
            o_g = sigmoid(gates[:, 3 * rnn_hidden:4 * rnn_hidden])
            c = f_g * c + i_g * g_g
            h = o_g * jnp.tanh(c)

        # ---- Linear head on h_T (== h_n[-1] for a single-layer LSTM) ----
        o_ref[...] = (jnp.dot(h, wout_ref[...], preferred_element_type=f32)
                      + bout_ref[...])

    return kernel


# ------------------------------- wrapper (glue) ---------------------------------
def image_classif_lstm_forward(x, params):
    """Forward pass of ImageClassifLSTM as one fused Pallas TPU kernel."""
    f32 = jnp.float32
    B, C_in, Hs, Ws = x.shape
    assert C_in == 3 and Hs == Ws and Hs % PATCH == 0
    rnn_hidden = params["w_hh"].shape[1]
    classes = params["w_out"].shape[0]
    n = Hs // PATCH
    G = 4 * rnn_hidden

    # Input layout plumbing (tiny XLA ops): channel-major, rows zero-padded,
    # flattened to one lane axis, +1 halo element each side so every 3x3 tap in
    # the kernel is a static, in-bounds lane window of length Hs*Ws.
    xt = jnp.transpose(x.astype(f32), (1, 0, 2, 3))            # (3, B, Hs, Ws)
    xt = jnp.pad(xt, ((0, 0), (0, 0), (1, 1), (0, 0)))         # (3, B, Hs+2, Ws)
    xf = jnp.pad(xt.reshape(3, B, (Hs + 2) * Ws), ((0, 0), (0, 0), (1, 1)))

    # Parameter preprocessing: fold the 8x8 patch unfold into W_ih so the whole
    # input projection is a dense matmul on the lane-dense feature map.
    wihT = params["w_ih"].astype(f32).T                        # (64, G) gates i,f,g,o
    w4 = wihT.reshape(PATCH, PATCH, G)                         # [k, j, gate]
    eyen = jnp.eye(n, dtype=f32)
    # win[k*Ws + c*PATCH + j, c*G + g] = W_ih[g, k*PATCH + j]
    win = jnp.einsum("kjg,cd->kcjdg", w4, eyen).reshape(PATCH * Ws, n * G)
    bias = (params["b_ih"] + params["b_hh"]).astype(f32)
    bin_ = jnp.tile(bias[None, :], (1, n))                     # (1, n*G)

    whhT = params["w_hh"].astype(f32).T                        # (rnn_hidden, G)
    woutT = params["w_out"].astype(f32).T                      # (rnn_hidden, classes)
    bout = params["b_out"].astype(f32).reshape(1, -1)
    cw = params["conv_w"].astype(f32).reshape(-1)              # (27,)
    gamma = params["bn_gamma"].astype(f32).reshape(-1)
    beta = params["bn_beta"].astype(f32).reshape(-1)

    vmem = pl.BlockSpec(memory_space=pltpu.MemorySpace.VMEM)
    smem = pl.BlockSpec(memory_space=pltpu.MemorySpace.SMEM)
    # Whole model in one ungridded pallas_call: working set < 200 KB, trivially
    # VMEM resident on v5e/v6e/v7x. If batch grows, add a grid over B with
    # dimension_semantics=("parallel",) so v7x's two TensorCores share the work.
    # TODO(synk): stacked_rnn_layers > 1 not implemented (module default is 1).
    return pl.pallas_call(
        _make_kernel(B, Hs, Ws, rnn_hidden),
        out_shape=jax.ShapeDtypeStruct((B, classes), f32),
        in_specs=[vmem, smem, smem, smem, vmem, vmem, vmem, vmem, vmem],
        out_specs=vmem,
    )(xf, cw, gamma, beta, win, bin_, whhT, woutT, bout)


# ------------------------- pure-JAX reference (self-check) ----------------------
def reference_forward(x, params):
    f32 = jnp.float32
    hp = lax.Precision.HIGHEST
    B = x.shape[0]
    feat = lax.conv_general_dilated(
        x.astype(f32), params["conv_w"].astype(f32), (1, 1), "SAME",
        dimension_numbers=("NCHW", "OIHW", "NCHW"), precision=hp)
    mean = jnp.mean(feat)
    var = jnp.mean((feat - mean) ** 2)
    feat = (feat - mean) * lax.rsqrt(var + 1e-5) * params["bn_gamma"][0] \
           + params["bn_beta"][0]
    feat = jnp.maximum(feat, 0.0)[:, 0]                        # (B, Hs, Ws)
    Hs = feat.shape[1]
    n = Hs // PATCH
    seq = (feat.reshape(B, n, PATCH, n, PATCH)
               .transpose(1, 3, 0, 2, 4)
               .reshape(n * n, B, PATCH * PATCH))              # (L, B, 64)
    H = params["w_hh"].shape[1]
    wihT = params["w_ih"].astype(f32).T
    whhT = params["w_hh"].astype(f32).T
    b = (params["b_ih"] + params["b_hh"]).astype(f32)
    h = jnp.zeros((B, H), f32)
    c = jnp.zeros((B, H), f32)
    for t in range(seq.shape[0]):
        g = jnp.dot(seq[t], wihT, precision=hp) + jnp.dot(h, whhT, precision=hp) + b
        i_g = jax.nn.sigmoid(g[:, :H])
        f_g = jax.nn.sigmoid(g[:, H:2 * H])
        g_g = jnp.tanh(g[:, 2 * H:3 * H])
        o_g = jax.nn.sigmoid(g[:, 3 * H:4 * H])
        c = f_g * c + i_g * g_g
        h = o_g * jnp.tanh(c)
    return jnp.dot(h, params["w_out"].astype(f32).T, precision=hp) \
           + params["b_out"].astype(f32)


if __name__ == "__main__":
    # Module config consistent with forward(): input_size=16, input_dim=8**2=64,
    # rnn_hidden=32, classes=10, stacked_rnn_layers=1; batch=2, NCHW input.
    B, input_size, rnn_hidden, classes = 2, 16, 32, 10
    input_dim = PATCH * PATCH

    key = jax.random.PRNGKey(0)
    ks = jax.random.split(key, 8)
    params = {
        "conv_w":   0.1 * jax.random.normal(ks[0], (1, 3, 3, 3), jnp.float32),
        "bn_gamma": jnp.ones((1,), jnp.float32),
        "bn_beta":  jnp.zeros((1,), jnp.float32),
        "w_ih":     0.1 * jax.random.normal(ks[1], (4 * rnn_hidden, input_dim), jnp.float32),
        "w_hh":     0.1 * jax.random.normal(ks[2], (4 * rnn_hidden, rnn_hidden), jnp.float32),
        "b_ih":     0.01 * jax.random.normal(ks[3], (4 * rnn_hidden,), jnp.float32),
        "b_hh":     0.01 * jax.random.normal(ks[4], (4 * rnn_hidden,), jnp.float32),
        "w_out":    0.1 * jax.random.normal(ks[5], (classes, rnn_hidden), jnp.float32),
        "b_out":    0.01 * jax.random.normal(ks[6], (classes,), jnp.float32),
    }
    x = jax.random.normal(ks[7], (B, 3, input_size, input_size), jnp.float32)

    fwd = jax.jit(image_classif_lstm_forward)
    out = jax.block_until_ready(fwd(x, params))
    assert out.shape == (B, classes) and out.dtype == jnp.float32

    ref = jax.block_until_ready(reference_forward(x, params))
    assert float(jnp.max(jnp.abs(out - ref))) < 2e-2, "mismatch vs pure-JAX reference"
    print("KERNEL_OK")
</pallas_src>

<mosaic_0001>
module attributes {stable_mosaic.version = 11 : i64} {
  func.func @kernel(%arg0: memref<3x2x290xf32, #tpu.memory_space<vmem>>, %arg1: memref<27xf32, #tpu.memory_space<smem>>, %arg2: memref<1xf32, #tpu.memory_space<smem>>, %arg3: memref<1xf32, #tpu.memory_space<smem>>, %arg4: memref<128x256xf32, #tpu.memory_space<vmem>>, %arg5: memref<1x256xf32, #tpu.memory_space<vmem>>, %arg6: memref<32x128xf32, #tpu.memory_space<vmem>>, %arg7: memref<32x10xf32, #tpu.memory_space<vmem>>, %arg8: memref<1x10xf32, #tpu.memory_space<vmem>>, %arg9: memref<2x10xf32, #tpu.memory_space<vmem>>) attributes {dimension_semantics = [], scalar_prefetch = 0 : i64, scratch_operands = 0 : i64, tpu.core_type = #tpu.core_type<tc>} {
    %c0 = arith.constant 0 : index
    %c0_0 = arith.constant 0 : index
    %c0_1 = arith.constant 0 : index
    %0 = vector.load %arg0[%c0, %c0_0, %c0_1] : memref<3x2x290xf32, #tpu.memory_space<vmem>>, vector<3x2x290xf32>
    %1 = tpu.iota {dimensions = array<i32: 1>} : vector<2x256xi32>
    %c16_i32 = arith.constant 16 : i32
    %c0_i32 = arith.constant 0 : i32
    %2 = arith.cmpi eq, %c16_i32, %c0_i32 : i32
    %c1_i32 = arith.constant 1 : i32
    %3 = arith.select %2, %c1_i32, %c16_i32 : i32
    %4 = vector.broadcast %3 : i32 to vector<2x256xi32>
    %5 = arith.remsi %1, %4 : vector<2x256xi32>
    %c0_i32_2 = arith.constant 0 : i32
    %6 = vector.broadcast %c0_i32_2 : i32 to vector<2x256xi32>
    %7 = arith.cmpi ne, %5, %6 : vector<2x256xi32>
    %c0_i32_3 = arith.constant 0 : i32
    %8 = vector.broadcast %c0_i32_3 : i32 to vector<2x256xi32>
    %9 = arith.cmpi slt, %5, %8 : vector<2x256xi32>
    %c0_i32_4 = arith.constant 0 : i32
    %10 = arith.cmpi slt, %3, %c0_i32_4 : i32
    %11 = vector.broadcast %10 : i1 to vector<2x256xi1>
    %12 = vector.broadcast %11 : vector<2x256xi1> to vector<2x256xi1>
    %13 = arith.xori %9, %12 : vector<2x256xi1>
    %14 = arith.andi %13, %7 : vector<2x256xi1>
    %15 = vector.broadcast %3 : i32 to vector<2x256xi32>
    %16 = arith.addi %5, %15 : vector<2x256xi32>
    %17 = arith.select %14, %16, %5 : vector<2x256xi1>, vector<2x256xi32>
    %cst = arith.constant 0.000000e+00 : f32
    %18 = vector.broadcast %cst : f32 to vector<2x256xf32>
    %cst_5 = arith.constant 0.000000e+00 : f32
    %19 = vector.broadcast %cst_5 : f32 to vector<2x256xf32>
    %20 = vector.extract_strided_slice %0 {offsets = [0, 0, 0], sizes = [3, 2, 256], strides = [1, 1, 1]} : vector<3x2x290xf32> to vector<3x2x256xf32>
    %21 = vector.extract_strided_slice %20 {offsets = [0, 0, 0], sizes = [1, 2, 256], strides = [1, 1, 1]} : vector<3x2x256xf32> to vector<1x2x256xf32>
    %22 = vector.shape_cast %21 : vector<1x2x256xf32> to vector<2x256xf32>
    %c0_6 = arith.constant 0 : index
    %23 = memref.load %arg1[%c0_6] : memref<27xf32, #tpu.memory_space<smem>>
    %24 = vector.broadcast %23 : f32 to vector<2x256xf32>
    %25 = arith.mulf %22, %24 : vector<2x256xf32>
    %26 = arith.addf %19, %25 : vector<2x256xf32>
    %27 = vector.extract_strided_slice %20 {offsets = [1, 0, 0], sizes = [1, 2, 256], strides = [1, 1, 1]} : vector<3x2x256xf32> to vector<1x2x256xf32>
    %28 = vector.shape_cast %27 : vector<1x2x256xf32> to vector<2x256xf32>
    %c9 = arith.constant 9 : index
    %29 = memref.load %arg1[%c9] : memref<27xf32, #tpu.memory_space<smem>>
    %30 = vector.broadcast %29 : f32 to vector<2x256xf32>
    %31 = arith.mulf %28, %30 : vector<2x256xf32>
    %32 = arith.addf %26, %31 : vector<2x256xf32>
    %33 = vector.extract_strided_slice %20 {offsets = [2, 0, 0], sizes = [1, 2, 256], strides = [1, 1, 1]} : vector<3x2x256xf32> to vector<1x2x256xf32>
    %34 = vector.shape_cast %33 : vector<1x2x256xf32> to vector<2x256xf32>
    %c18 = arith.constant 18 : index
    %35 = memref.load %arg1[%c18] : memref<27xf32, #tpu.memory_space<smem>>
    %36 = vector.broadcast %35 : f32 to vector<2x256xf32>
    %37 = arith.mulf %34, %36 : vector<2x256xf32>
    %38 = arith.addf %32, %37 : vector<2x256xf32>
    %39 = vector.extract_strided_slice %0 {offsets = [0, 0, 16], sizes = [3, 2, 256], strides = [1, 1, 1]} : vector<3x2x290xf32> to vector<3x2x256xf32>
    %40 = vector.extract_strided_slice %39 {offsets = [0, 0, 0], sizes = [1, 2, 256], strides = [1, 1, 1]} : vector<3x2x256xf32> to vector<1x2x256xf32>
    %41 = vector.shape_cast %40 : vector<1x2x256xf32> to vector<2x256xf32>
    %c3 = arith.constant 3 : index
    %42 = memref.load %arg1[%c3] : memref<27xf32, #tpu.memory_space<smem>>
    %43 = vector.broadcast %42 : f32 to vector<2x256xf32>
    %44 = arith.mulf %41, %43 : vector<2x256xf32>
    %45 = arith.addf %38, %44 : vector<2x256xf32>
    %46 = vector.extract_strided_slice %39 {offsets = [1, 0, 0], sizes = [1, 2, 256], strides = [1, 1, 1]} : vector<3x2x256xf32> to vector<1x2x256xf32>
    %47 = vector.shape_cast %46 : vector<1x2x256xf32> to vector<2x256xf32>
    %c12 = arith.constant 12 : index
    %48 = memref.load %arg1[%c12] : memref<27xf32, #tpu.memory_space<smem>>
    %49 = vector.broadcast %48 : f32 to vector<2x256xf32>
    %50 = arith.mulf %47, %49 : vector<2x256xf32>
    %51 = arith.addf %45, %50 : vector<2x256xf32>
    %52 = vector.extract_strided_slice %39 {offsets = [2, 0, 0], sizes = [1, 2, 256], strides = [1, 1, 1]} : vector<3x2x256xf32> to vector<1x2x256xf32>
    %53 = vector.shape_cast %52 : vector<1x2x256xf32> to vector<2x256xf32>
    %c21 = arith.constant 21 : index
    %54 = memref.load %arg1[%c21] : memref<27xf32, #tpu.memory_space<smem>>
    %55 = vector.broadcast %54 : f32 to vector<2x256xf32>
    %56 = arith.mulf %53, %55 : vector<2x256xf32>
    %57 = arith.addf %51, %56 : vector<2x256xf32>
    %58 = vector.extract_strided_slice %0 {offsets = [0, 0, 32], sizes = [3, 2, 256], strides = [1, 1, 1]} : vector<3x2x290xf32> to vector<3x2x256xf32>
    %59 = vector.extract_strided_slice %58 {offsets = [0, 0, 0], sizes = [1, 2, 256], strides = [1, 1, 1]} : vector<3x2x256xf32> to vector<1x2x256xf32>
    %60 = vector.shape_cast %59 : vector<1x2x256xf32> to vector<2x256xf32>
    %c6 = arith.constant 6 : index
    %61 = memref.load %arg1[%c6] : memref<27xf32, #tpu.memory_space<smem>>
    %62 = vector.broadcast %61 : f32 to vector<2x256xf32>
    %63 = arith.mulf %60, %62 : vector<2x256xf32>
    %64 = arith.addf %57, %63 : vector<2x256xf32>
    %65 = vector.extract_strided_slice %58 {offsets = [1, 0, 0], sizes = [1, 2, 256], strides = [1, 1, 1]} : vector<3x2x256xf32> to vector<1x2x256xf32>
    %66 = vector.shape_cast %65 : vector<1x2x256xf32> to vector<2x256xf32>
    %c15 = arith.constant 15 : index
    %67 = memref.load %arg1[%c15] : memref<27xf32, #tpu.memory_space<smem>>
    %68 = vector.broadcast %67 : f32 to vector<2x256xf32>
    %69 = arith.mulf %66, %68 : vector<2x256xf32>
    %70 = arith.addf %64, %69 : vector<2x256xf32>
    %71 = vector.extract_strided_slice %58 {offsets = [2, 0, 0], sizes = [1, 2, 256], strides = [1, 1, 1]} : vector<3x2x256xf32> to vector<1x2x256xf32>
    %72 = vector.shape_cast %71 : vector<1x2x256xf32> to vector<2x256xf32>
    %c24 = arith.constant 24 : index
    %73 = memref.load %arg1[%c24] : memref<27xf32, #tpu.memory_space<smem>>
    %74 = vector.broadcast %73 : f32 to vector<2x256xf32>
    %75 = arith.mulf %72, %74 : vector<2x256xf32>
    %76 = arith.addf %70, %75 : vector<2x256xf32>
    %c0_i32_7 = arith.constant 0 : i32
    %77 = vector.broadcast %c0_i32_7 : i32 to vector<2x256xi32>
    %78 = arith.cmpi eq, %17, %77 : vector<2x256xi32>
    %cst_8 = arith.constant 0.000000e+00 : f32
    %79 = vector.broadcast %cst_8 : f32 to vector<2x256xf32>
    %80 = arith.select %78, %79, %76 : vector<2x256xi1>, vector<2x256xf32>
    %81 = arith.addf %18, %80 : vector<2x256xf32>
    %cst_9 = arith.constant 0.000000e+00 : f32
    %82 = vector.broadcast %cst_9 : f32 to vector<2x256xf32>
    %83 = vector.extract_strided_slice %0 {offsets = [0, 0, 1], sizes = [3, 2, 256], strides = [1, 1, 1]} : vector<3x2x290xf32> to vector<3x2x256xf32>
    %84 = vector.extract_strided_slice %83 {offsets = [0, 0, 0], sizes = [1, 2, 256], strides = [1, 1, 1]} : vector<3x2x256xf32> to vector<1x2x256xf32>
    %85 = vector.shape_cast %84 : vector<1x2x256xf32> to vector<2x256xf32>
    %c1 = arith.constant 1 : index
    %86 = memref.load %arg1[%c1] : memref<27xf32, #tpu.memory_space<smem>>
    %87 = vector.broadcast %86 : f32 to vector<2x256xf32>
    %88 = arith.mulf %85, %87 : vector<2x256xf32>
    %89 = arith.addf %82, %88 : vector<2x256xf32>
    %90 = vector.extract_strided_slice %83 {offsets = [1, 0, 0], sizes = [1, 2, 256], strides = [1, 1, 1]} : vector<3x2x256xf32> to vector<1x2x256xf32>
    %91 = vector.shape_cast %90 : vector<1x2x256xf32> to vector<2x256xf32>
    %c10 = arith.constant 10 : index
    %92 = memref.load %arg1[%c10] : memref<27xf32, #tpu.memory_space<smem>>
    %93 = vector.broadcast %92 : f32 to vector<2x256xf32>
    %94 = arith.mulf %91, %93 : vector<2x256xf32>
    %95 = arith.addf %89, %94 : vector<2x256xf32>
    %96 = vector.extract_strided_slice %83 {offsets = [2, 0, 0], sizes = [1, 2, 256], strides = [1, 1, 1]} : vector<3x2x256xf32> to vector<1x2x256xf32>
    %97 = vector.shape_cast %96 : vector<1x2x256xf32> to vector<2x256xf32>
    %c19 = arith.constant 19 : index
    %98 = memref.load %arg1[%c19] : memref<27xf32, #tpu.memory_space<smem>>
    %99 = vector.broadcast %98 : f32 to vector<2x256xf32>
    %100 = arith.mulf %97, %99 : vector<2x256xf32>
    %101 = arith.addf %95, %100 : vector<2x256xf32>
    %102 = vector.extract_strided_slice %0 {offsets = [0, 0, 17], sizes = [3, 2, 256], strides = [1, 1, 1]} : vector<3x2x290xf32> to vector<3x2x256xf32>
    %103 = vector.extract_strided_slice %102 {offsets = [0, 0, 0], sizes = [1, 2, 256], strides = [1, 1, 1]} : vector<3x2x256xf32> to vector<1x2x256xf32>
    %104 = vector.shape_cast %103 : vector<1x2x256xf32> to vector<2x256xf32>
    %c4 = arith.constant 4 : index
    %105 = memref.load %arg1[%c4] : memref<27xf32, #tpu.memory_space<smem>>
    %106 = vector.broadcast %105 : f32 to vector<2x256xf32>
    %107 = arith.mulf %104, %106 : vector<2x256xf32>
    %108 = arith.addf %101, %107 : vector<2x256xf32>
    %109 = vector.extract_strided_slice %102 {offsets = [1, 0, 0], sizes = [1, 2, 256], strides = [1, 1, 1]} : vector<3x2x256xf32> to vector<1x2x256xf32>
    %110 = vector.shape_cast %109 : vector<1x2x256xf32> to vector<2x256xf32>
    %c13 = arith.constant 13 : index
    %111 = memref.load %arg1[%c13] : memref<27xf32, #tpu.memory_space<smem>>
    %112 = vector.broadcast %111 : f32 to vector<2x256xf32>
    %113 = arith.mulf %110, %112 : vector<2x256xf32>
    %114 = arith.addf %108, %113 : vector<2x256xf32>
    %115 = vector.extract_strided_slice %102 {offsets = [2, 0, 0], sizes = [1, 2, 256], strides = [1, 1, 1]} : vector<3x2x256xf32> to vector<1x2x256xf32>
    %116 = vector.shape_cast %115 : vector<1x2x256xf32> to vector<2x256xf32>
    %c22 = arith.constant 22 : index
    %117 = memref.load %arg1[%c22] : memref<27xf32, #tpu.memory_space<smem>>
    %118 = vector.broadcast %117 : f32 to vector<2x256xf32>
    %119 = arith.mulf %116, %118 : vector<2x256xf32>
    %120 = arith.addf %114, %119 : vector<2x256xf32>
    %121 = vector.extract_strided_slice %0 {offsets = [0, 0, 33], sizes = [3, 2, 256], strides = [1, 1, 1]} : vector<3x2x290xf32> to vector<3x2x256xf32>
    %122 = vector.extract_strided_slice %121 {offsets = [0, 0, 0], sizes = [1, 2, 256], strides = [1, 1, 1]} : vector<3x2x256xf32> to vector<1x2x256xf32>
    %123 = vector.shape_cast %122 : vector<1x2x256xf32> to vector<2x256xf32>
    %c7 = arith.constant 7 : index
    %124 = memref.load %arg1[%c7] : memref<27xf32, #tpu.memory_space<smem>>
    %125 = vector.broadcast %124 : f32 to vector<2x256xf32>
    %126 = arith.mulf %123, %125 : vector<2x256xf32>
    %127 = arith.addf %120, %126 : vector<2x256xf32>
    %128 = vector.extract_strided_slice %121 {offsets = [1, 0, 0], sizes = [1, 2, 256], strides = [1, 1, 1]} : vector<3x2x256xf32> to vector<1x2x256xf32>
    %129 = vector.shape_cast %128 : vector<1x2x256xf32> to vector<2x256xf32>
    %c16 = arith.constant 16 : index
    %130 = memref.load %arg1[%c16] : memref<27xf32, #tpu.memory_space<smem>>
    %131 = vector.broadcast %130 : f32 to vector<2x256xf32>
    %132 = arith.mulf %129, %131 : vector<2x256xf32>
    %133 = arith.addf %127, %132 : vector<2x256xf32>
    %134 = vector.extract_strided_slice %121 {offsets = [2, 0, 0], sizes = [1, 2, 256], strides = [1, 1, 1]} : vector<3x2x256xf32> to vector<1x2x256xf32>
    %135 = vector.shape_cast %134 : vector<1x2x256xf32> to vector<2x256xf32>
    %c25 = arith.constant 25 : index
    %136 = memref.load %arg1[%c25] : memref<27xf32, #tpu.memory_space<smem>>
    %137 = vector.broadcast %136 : f32 to vector<2x256xf32>
    %138 = arith.mulf %135, %137 : vector<2x256xf32>
    %139 = arith.addf %133, %138 : vector<2x256xf32>
    %140 = arith.addf %81, %139 : vector<2x256xf32>
    %cst_10 = arith.constant 0.000000e+00 : f32
    %141 = vector.broadcast %cst_10 : f32 to vector<2x256xf32>
    %142 = vector.extract_strided_slice %0 {offsets = [0, 0, 2], sizes = [3, 2, 256], strides = [1, 1, 1]} : vector<3x2x290xf32> to vector<3x2x256xf32>
    %143 = vector.extract_strided_slice %142 {offsets = [0, 0, 0], sizes = [1, 2, 256], strides = [1, 1, 1]} : vector<3x2x256xf32> to vector<1x2x256xf32>
    %144 = vector.shape_cast %143 : vector<1x2x256xf32> to vector<2x256xf32>
    %c2 = arith.constant 2 : index
    %145 = memref.load %arg1[%c2] : memref<27xf32, #tpu.memory_space<smem>>
    %146 = vector.broadcast %145 : f32 to vector<2x256xf32>
    %147 = arith.mulf %144, %146 : vector<2x256xf32>
    %148 = arith.addf %141, %147 : vector<2x256xf32>
    %149 = vector.extract_strided_slice %142 {offsets = [1, 0, 0], sizes = [1, 2, 256], strides = [1, 1, 1]} : vector<3x2x256xf32> to vector<1x2x256xf32>
    %150 = vector.shape_cast %149 : vector<1x2x256xf32> to vector<2x256xf32>
    %c11 = arith.constant 11 : index
    %151 = memref.load %arg1[%c11] : memref<27xf32, #tpu.memory_space<smem>>
    %152 = vector.broadcast %151 : f32 to vector<2x256xf32>
    %153 = arith.mulf %150, %152 : vector<2x256xf32>
    %154 = arith.addf %148, %153 : vector<2x256xf32>
    %155 = vector.extract_strided_slice %142 {offsets = [2, 0, 0], sizes = [1, 2, 256], strides = [1, 1, 1]} : vector<3x2x256xf32> to vector<1x2x256xf32>
    %156 = vector.shape_cast %155 : vector<1x2x256xf32> to vector<2x256xf32>
    %c20 = arith.constant 20 : index
    %157 = memref.load %arg1[%c20] : memref<27xf32, #tpu.memory_space<smem>>
    %158 = vector.broadcast %157 : f32 to vector<2x256xf32>
    %159 = arith.mulf %156, %158 : vector<2x256xf32>
    %160 = arith.addf %154, %159 : vector<2x256xf32>
    %161 = vector.extract_strided_slice %0 {offsets = [0, 0, 18], sizes = [3, 2, 256], strides = [1, 1, 1]} : vector<3x2x290xf32> to vector<3x2x256xf32>
    %162 = vector.extract_strided_slice %161 {offsets = [0, 0, 0], sizes = [1, 2, 256], strides = [1, 1, 1]} : vector<3x2x256xf32> to vector<1x2x256xf32>
    %163 = vector.shape_cast %162 : vector<1x2x256xf32> to vector<2x256xf32>
    %c5 = arith.constant 5 : index
    %164 = memref.load %arg1[%c5] : memref<27xf32, #tpu.memory_space<smem>>
    %165 = vector.broadcast %164 : f32 to vector<2x256xf32>
    %166 = arith.mulf %163, %165 : vector<2x256xf32>
    %167 = arith.addf %160, %166 : vector<2x256xf32>
    %168 = vector.extract_strided_slice %161 {offsets = [1, 0, 0], sizes = [1, 2, 256], strides = [1, 1, 1]} : vector<3x2x256xf32> to vector<1x2x256xf32>
    %169 = vector.shape_cast %168 : vector<1x2x256xf32> to vector<2x256xf32>
    %c14 = arith.constant 14 : index
    %170 = memref.load %arg1[%c14] : memref<27xf32, #tpu.memory_space<smem>>
    %171 = vector.broadcast %170 : f32 to vector<2x256xf32>
    %172 = arith.mulf %169, %171 : vector<2x256xf32>
    %173 = arith.addf %167, %172 : vector<2x256xf32>
    %174 = vector.extract_strided_slice %161 {offsets = [2, 0, 0], sizes = [1, 2, 256], strides = [1, 1, 1]} : vector<3x2x256xf32> to vector<1x2x256xf32>
    %175 = vector.shape_cast %174 : vector<1x2x256xf32> to vector<2x256xf32>
    %c23 = arith.constant 23 : index
    %176 = memref.load %arg1[%c23] : memref<27xf32, #tpu.memory_space<smem>>
    %177 = vector.broadcast %176 : f32 to vector<2x256xf32>
    %178 = arith.mulf %175, %177 : vector<2x256xf32>
    %179 = arith.addf %173, %178 : vector<2x256xf32>
    %180 = vector.extract_strided_slice %0 {offsets = [0, 0, 34], sizes = [3, 2, 256], strides = [1, 1, 1]} : vector<3x2x290xf32> to vector<3x2x256xf32>
    %181 = vector.extract_strided_slice %180 {offsets = [0, 0, 0], sizes = [1, 2, 256], strides = [1, 1, 1]} : vector<3x2x256xf32> to vector<1x2x256xf32>
    %182 = vector.shape_cast %181 : vector<1x2x256xf32> to vector<2x256xf32>
    %c8 = arith.constant 8 : index
    %183 = memref.load %arg1[%c8] : memref<27xf32, #tpu.memory_space<smem>>
    %184 = vector.broadcast %183 : f32 to vector<2x256xf32>
    %185 = arith.mulf %182, %184 : vector<2x256xf32>
    %186 = arith.addf %179, %185 : vector<2x256xf32>
    %187 = vector.extract_strided_slice %180 {offsets = [1, 0, 0], sizes = [1, 2, 256], strides = [1, 1, 1]} : vector<3x2x256xf32> to vector<1x2x256xf32>
    %188 = vector.shape_cast %187 : vector<1x2x256xf32> to vector<2x256xf32>
    %c17 = arith.constant 17 : index
    %189 = memref.load %arg1[%c17] : memref<27xf32, #tpu.memory_space<smem>>
    %190 = vector.broadcast %189 : f32 to vector<2x256xf32>
    %191 = arith.mulf %188, %190 : vector<2x256xf32>
    %192 = arith.addf %186, %191 : vector<2x256xf32>
    %193 = vector.extract_strided_slice %180 {offsets = [2, 0, 0], sizes = [1, 2, 256], strides = [1, 1, 1]} : vector<3x2x256xf32> to vector<1x2x256xf32>
    %194 = vector.shape_cast %193 : vector<1x2x256xf32> to vector<2x256xf32>
    %c26 = arith.constant 26 : index
    %195 = memref.load %arg1[%c26] : memref<27xf32, #tpu.memory_space<smem>>
    %196 = vector.broadcast %195 : f32 to vector<2x256xf32>
    %197 = arith.mulf %194, %196 : vector<2x256xf32>
    %198 = arith.addf %192, %197 : vector<2x256xf32>
    %c15_i32 = arith.constant 15 : i32
    %199 = vector.broadcast %c15_i32 : i32 to vector<2x256xi32>
    %200 = arith.cmpi eq, %17, %199 : vector<2x256xi32>
    %cst_11 = arith.constant 0.000000e+00 : f32
    %201 = vector.broadcast %cst_11 : f32 to vector<2x256xf32>
    %202 = arith.select %200, %201, %198 : vector<2x256xi1>, vector<2x256xf32>
    %203 = arith.addf %140, %202 : vector<2x256xf32>
    %204 = vector.shape_cast %203 : vector<2x256xf32> to vector<1x2x256xf32>
    %cst_12 = arith.constant dense<0.000000e+00> : vector<1xf32>
    %205 = vector.multi_reduction <add>, %204, %cst_12 [1, 2] : vector<1x2x256xf32> to vector<1xf32>
    %206 = vector.shape_cast %205 : vector<1xf32> to vector<1x1x1xf32>
    %207 = vector.extract %206[0, 0, 0] : f32 from vector<1x1x1xf32>
    %208 = vector.broadcast %207 : f32 to vector<1x1xf32>
    %209 = arith.mulf %203, %203 : vector<2x256xf32>
    %210 = vector.shape_cast %209 : vector<2x256xf32> to vector<1x2x256xf32>
    %cst_13 = arith.constant dense<0.000000e+00> : vector<1xf32>
    %211 = vector.multi_reduction <add>, %210, %cst_13 [1, 2] : vector<1x2x256xf32> to vector<1xf32>
    %212 = vector.shape_cast %211 : vector<1xf32> to vector<1x1x1xf32>
    %213 = vector.extract %212[0, 0, 0] : f32 from vector<1x1x1xf32>
    %214 = vector.broadcast %213 : f32 to vector<1x1xf32>
    %cst_14 = arith.constant 5.120000e+02 : f32
    %215 = vector.broadcast %cst_14 : f32 to vector<1x1xf32>
    %216 = arith.divf %208, %215 : vector<1x1xf32>
    %cst_15 = arith.constant 5.120000e+02 : f32
    %217 = vector.broadcast %cst_15 : f32 to vector<1x1xf32>
    %218 = arith.divf %214, %217 : vector<1x1xf32>
    %219 = arith.mulf %216, %216 : vector<1x1xf32>
    %220 = arith.subf %218, %219 : vector<1x1xf32>
    %cst_16 = arith.constant 9.99999974E-6 : f32
    %221 = vector.broadcast %cst_16 : f32 to vector<1x1xf32>
    %222 = arith.addf %220, %221 : vector<1x1xf32>
    %223 = math.rsqrt %222 : vector<1x1xf32>
    %c0_17 = arith.constant 0 : index
    %224 = memref.load %arg2[%c0_17] : memref<1xf32, #tpu.memory_space<smem>>
    %225 = vector.broadcast %224 : f32 to vector<1x1xf32>
    %226 = arith.mulf %223, %225 : vector<1x1xf32>
    %227 = vector.broadcast %216 : vector<1x1xf32> to vector<2x256xf32>
    %228 = arith.subf %203, %227 : vector<2x256xf32>
    %229 = vector.broadcast %226 : vector<1x1xf32> to vector<2x256xf32>
    %230 = arith.mulf %228, %229 : vector<2x256xf32>
    %c0_18 = arith.constant 0 : index
    %231 = memref.load %arg3[%c0_18] : memref<1xf32, #tpu.memory_space<smem>>
    %232 = vector.broadcast %231 : f32 to vector<2x256xf32>
    %233 = arith.addf %230, %232 : vector<2x256xf32>
    %cst_19 = arith.constant 0.000000e+00 : f32
    %234 = vector.broadcast %cst_19 : f32 to vector<2x256xf32>
    %235 = arith.maximumf %233, %234 : vector<2x256xf32>
    %c0_20 = arith.constant 0 : index
    %c0_21 = arith.constant 0 : index
    %236 = vector.load %arg4[%c0_20, %c0_21] : memref<128x256xf32, #tpu.memory_space<vmem>>, vector<128x256xf32>
    %c0_22 = arith.constant 0 : index
    %c0_23 = arith.constant 0 : index
    %237 = vector.load %arg5[%c0_22, %c0_23] : memref<1x256xf32, #tpu.memory_space<vmem>>, vector<1x256xf32>
    %238 = vector.extract_strided_slice %235 {offsets = [0, 0], sizes = [2, 128], strides = [1, 1]} : vector<2x256xf32> to vector<2x128xf32>
    %cst_24 = arith.constant dense<0.000000e+00> : vector<2x256xf32>
    %239 = tpu.matmul %238, %236, %cst_24 {dimension_numbers = #tpu.dot_dimension_numbers<[1], [0], [0], [1], [0, 0, 1, 1], [], []>} : vector<2x128xf32>, vector<128x256xf32>, vector<2x256xf32> -> vector<2x256xf32>
    %240 = vector.broadcast %237 : vector<1x256xf32> to vector<2x256xf32>
    %241 = arith.addf %239, %240 : vector<2x256xf32>
    %242 = vector.extract_strided_slice %235 {offsets = [0, 128], sizes = [2, 128], strides = [1, 1]} : vector<2x256xf32> to vector<2x128xf32>
    %cst_25 = arith.constant dense<0.000000e+00> : vector<2x256xf32>
    %243 = tpu.matmul %242, %236, %cst_25 {dimension_numbers = #tpu.dot_dimension_numbers<[1], [0], [0], [1], [0, 0, 1, 1], [], []>} : vector<2x128xf32>, vector<128x256xf32>, vector<2x256xf32> -> vector<2x256xf32>
    %244 = vector.broadcast %237 : vector<1x256xf32> to vector<2x256xf32>
    %245 = arith.addf %243, %244 : vector<2x256xf32>
    %c0_26 = arith.constant 0 : index
    %c0_27 = arith.constant 0 : index
    %246 = vector.load %arg6[%c0_26, %c0_27] : memref<32x128xf32, #tpu.memory_space<vmem>>, vector<32x128xf32>
    %cst_28 = arith.constant 0.000000e+00 : f32
    %247 = vector.broadcast %cst_28 : f32 to vector<2x32xf32>
    %248 = vector.extract_strided_slice %241 {offsets = [0, 0], sizes = [2, 128], strides = [1, 1]} : vector<2x256xf32> to vector<2x128xf32>
    %249 = vector.extract_strided_slice %248 {offsets = [0, 0], sizes = [2, 32], strides = [1, 1]} : vector<2x128xf32> to vector<2x32xf32>
    %cst_29 = arith.constant 0.000000e+00 : f32
    %250 = vector.broadcast %cst_29 : f32 to vector<2x32xf32>
    %251 = arith.subf %250, %249 : vector<2x32xf32>
    %252 = math.exp %251 : vector<2x32xf32>
    %cst_30 = arith.constant 1.000000e+00 : f32
    %253 = vector.broadcast %cst_30 : f32 to vector<2x32xf32>
    %254 = arith.addf %253, %252 : vector<2x32xf32>
    %cst_31 = arith.constant 1.000000e+00 : f32
    %255 = vector.broadcast %cst_31 : f32 to vector<2x32xf32>
    %256 = arith.divf %255, %254 : vector<2x32xf32>
    %257 = vector.extract_strided_slice %248 {offsets = [0, 32], sizes = [2, 32], strides = [1, 1]} : vector<2x128xf32> to vector<2x32xf32>
    %cst_32 = arith.constant 0.000000e+00 : f32
    %258 = vector.broadcast %cst_32 : f32 to vector<2x32xf32>
    %259 = arith.subf %258, %257 : vector<2x32xf32>
    %260 = math.exp %259 : vector<2x32xf32>
    %cst_33 = arith.constant 1.000000e+00 : f32
    %261 = vector.broadcast %cst_33 : f32 to vector<2x32xf32>
    %262 = arith.addf %261, %260 : vector<2x32xf32>
    %cst_34 = arith.constant 1.000000e+00 : f32
    %263 = vector.broadcast %cst_34 : f32 to vector<2x32xf32>
    %264 = arith.divf %263, %262 : vector<2x32xf32>
    %265 = vector.extract_strided_slice %248 {offsets = [0, 64], sizes = [2, 32], strides = [1, 1]} : vector<2x128xf32> to vector<2x32xf32>
    %266 = math.tanh %265 : vector<2x32xf32>
    %267 = vector.extract_strided_slice %248 {offsets = [0, 96], sizes = [2, 32], strides = [1, 1]} : vector<2x128xf32> to vector<2x32xf32>
    %cst_35 = arith.constant 0.000000e+00 : f32
    %268 = vector.broadcast %cst_35 : f32 to vector<2x32xf32>
    %269 = arith.subf %268, %267 : vector<2x32xf32>
    %270 = math.exp %269 : vector<2x32xf32>
    %cst_36 = arith.constant 1.000000e+00 : f32
    %271 = vector.broadcast %cst_36 : f32 to vector<2x32xf32>
    %272 = arith.addf %271, %270 : vector<2x32xf32>
    %cst_37 = arith.constant 1.000000e+00 : f32
    %273 = vector.broadcast %cst_37 : f32 to vector<2x32xf32>
    %274 = arith.divf %273, %272 : vector<2x32xf32>
    %275 = arith.mulf %264, %247 : vector<2x32xf32>
    %276 = arith.mulf %256, %266 : vector<2x32xf32>
    %277 = arith.addf %275, %276 : vector<2x32xf32>
    %278 = math.tanh %277 : vector<2x32xf32>
    %279 = arith.mulf %274, %278 : vector<2x32xf32>
    %280 = vector.extract_strided_slice %241 {offsets = [0, 128], sizes = [2, 128], strides = [1, 1]} : vector<2x256xf32> to vector<2x128xf32>
    %cst_38 = arith.constant dense<0.000000e+00> : vector<2x128xf32>
    %281 = tpu.matmul %279, %246, %cst_38 {dimension_numbers = #tpu.dot_dimension_numbers<[1], [0], [0], [1], [0, 0, 1, 1], [], []>} : vector<2x32xf32>, vector<32x128xf32>, vector<2x128xf32> -> vector<2x128xf32>
    %282 = arith.addf %280, %281 : vector<2x128xf32>
    %283 = vector.extract_strided_slice %282 {offsets = [0, 0], sizes = [2, 32], strides = [1, 1]} : vector<2x128xf32> to vector<2x32xf32>
    %cst_39 = arith.constant 0.000000e+00 : f32
    %284 = vector.broadcast %cst_39 : f32 to vector<2x32xf32>
    %285 = arith.subf %284, %283 : vector<2x32xf32>
    %286 = math.exp %285 : vector<2x32xf32>
    %cst_40 = arith.constant 1.000000e+00 : f32
    %287 = vector.broadcast %cst_40 : f32 to vector<2x32xf32>
    %288 = arith.addf %287, %286 : vector<2x32xf32>
    %cst_41 = arith.constant 1.000000e+00 : f32
    %289 = vector.broadcast %cst_41 : f32 to vector<2x32xf32>
    %290 = arith.divf %289, %288 : vector<2x32xf32>
    %291 = vector.extract_strided_slice %282 {offsets = [0, 32], sizes = [2, 32], strides = [1, 1]} : vector<2x128xf32> to vector<2x32xf32>
    %cst_42 = arith.constant 0.000000e+00 : f32
    %292 = vector.broadcast %cst_42 : f32 to vector<2x32xf32>
    %293 = arith.subf %292, %291 : vector<2x32xf32>
    %294 = math.exp %293 : vector<2x32xf32>
    %cst_43 = arith.constant 1.000000e+00 : f32
    %295 = vector.broadcast %cst_43 : f32 to vector<2x32xf32>
    %296 = arith.addf %295, %294 : vector<2x32xf32>
    %cst_44 = arith.constant 1.000000e+00 : f32
    %297 = vector.broadcast %cst_44 : f32 to vector<2x32xf32>
    %298 = arith.divf %297, %296 : vector<2x32xf32>
    %299 = vector.extract_strided_slice %282 {offsets = [0, 64], sizes = [2, 32], strides = [1, 1]} : vector<2x128xf32> to vector<2x32xf32>
    %300 = math.tanh %299 : vector<2x32xf32>
    %301 = vector.extract_strided_slice %282 {offsets = [0, 96], sizes = [2, 32], strides = [1, 1]} : vector<2x128xf32> to vector<2x32xf32>
    %cst_45 = arith.constant 0.000000e+00 : f32
    %302 = vector.broadcast %cst_45 : f32 to vector<2x32xf32>
    %303 = arith.subf %302, %301 : vector<2x32xf32>
    %304 = math.exp %303 : vector<2x32xf32>
    %cst_46 = arith.constant 1.000000e+00 : f32
    %305 = vector.broadcast %cst_46 : f32 to vector<2x32xf32>
    %306 = arith.addf %305, %304 : vector<2x32xf32>
    %cst_47 = arith.constant 1.000000e+00 : f32
    %307 = vector.broadcast %cst_47 : f32 to vector<2x32xf32>
    %308 = arith.divf %307, %306 : vector<2x32xf32>
    %309 = arith.mulf %298, %277 : vector<2x32xf32>
    %310 = arith.mulf %290, %300 : vector<2x32xf32>
    %311 = arith.addf %309, %310 : vector<2x32xf32>
    %312 = math.tanh %311 : vector<2x32xf32>
    %313 = arith.mulf %308, %312 : vector<2x32xf32>
    %314 = vector.extract_strided_slice %245 {offsets = [0, 0], sizes = [2, 128], strides = [1, 1]} : vector<2x256xf32> to vector<2x128xf32>
    %cst_48 = arith.constant dense<0.000000e+00> : vector<2x128xf32>
    %315 = tpu.matmul %313, %246, %cst_48 {dimension_numbers = #tpu.dot_dimension_numbers<[1], [0], [0], [1], [0, 0, 1, 1], [], []>} : vector<2x32xf32>, vector<32x128xf32>, vector<2x128xf32> -> vector<2x128xf32>
    %316 = arith.addf %314, %315 : vector<2x128xf32>
    %317 = vector.extract_strided_slice %316 {offsets = [0, 0], sizes = [2, 32], strides = [1, 1]} : vector<2x128xf32> to vector<2x32xf32>
    %cst_49 = arith.constant 0.000000e+00 : f32
    %318 = vector.broadcast %cst_49 : f32 to vector<2x32xf32>
    %319 = arith.subf %318, %317 : vector<2x32xf32>
    %320 = math.exp %319 : vector<2x32xf32>
    %cst_50 = arith.constant 1.000000e+00 : f32
    %321 = vector.broadcast %cst_50 : f32 to vector<2x32xf32>
    %322 = arith.addf %321, %320 : vector<2x32xf32>
    %cst_51 = arith.constant 1.000000e+00 : f32
    %323 = vector.broadcast %cst_51 : f32 to vector<2x32xf32>
    %324 = arith.divf %323, %322 : vector<2x32xf32>
    %325 = vector.extract_strided_slice %316 {offsets = [0, 32], sizes = [2, 32], strides = [1, 1]} : vector<2x128xf32> to vector<2x32xf32>
    %cst_52 = arith.constant 0.000000e+00 : f32
    %326 = vector.broadcast %cst_52 : f32 to vector<2x32xf32>
    %327 = arith.subf %326, %325 : vector<2x32xf32>
    %328 = math.exp %327 : vector<2x32xf32>
    %cst_53 = arith.constant 1.000000e+00 : f32
    %329 = vector.broadcast %cst_53 : f32 to vector<2x32xf32>
    %330 = arith.addf %329, %328 : vector<2x32xf32>
    %cst_54 = arith.constant 1.000000e+00 : f32
    %331 = vector.broadcast %cst_54 : f32 to vector<2x32xf32>
    %332 = arith.divf %331, %330 : vector<2x32xf32>
    %333 = vector.extract_strided_slice %316 {offsets = [0, 64], sizes = [2, 32], strides = [1, 1]} : vector<2x128xf32> to vector<2x32xf32>
    %334 = math.tanh %333 : vector<2x32xf32>
    %335 = vector.extract_strided_slice %316 {offsets = [0, 96], sizes = [2, 32], strides = [1, 1]} : vector<2x128xf32> to vector<2x32xf32>
    %cst_55 = arith.constant 0.000000e+00 : f32
    %336 = vector.broadcast %cst_55 : f32 to vector<2x32xf32>
    %337 = arith.subf %336, %335 : vector<2x32xf32>
    %338 = math.exp %337 : vector<2x32xf32>
    %cst_56 = arith.constant 1.000000e+00 : f32
    %339 = vector.broadcast %cst_56 : f32 to vector<2x32xf32>
    %340 = arith.addf %339, %338 : vector<2x32xf32>
    %cst_57 = arith.constant 1.000000e+00 : f32
    %341 = vector.broadcast %cst_57 : f32 to vector<2x32xf32>
    %342 = arith.divf %341, %340 : vector<2x32xf32>
    %343 = arith.mulf %332, %311 : vector<2x32xf32>
    %344 = arith.mulf %324, %334 : vector<2x32xf32>
    %345 = arith.addf %343, %344 : vector<2x32xf32>
    %346 = math.tanh %345 : vector<2x32xf32>
    %347 = arith.mulf %342, %346 : vector<2x32xf32>
    %348 = vector.extract_strided_slice %245 {offsets = [0, 128], sizes = [2, 128], strides = [1, 1]} : vector<2x256xf32> to vector<2x128xf32>
    %cst_58 = arith.constant dense<0.000000e+00> : vector<2x128xf32>
    %349 = tpu.matmul %347, %246, %cst_58 {dimension_numbers = #tpu.dot_dimension_numbers<[1], [0], [0], [1], [0, 0, 1, 1], [], []>} : vector<2x32xf32>, vector<32x128xf32>, vector<2x128xf32> -> vector<2x128xf32>
    %350 = arith.addf %348, %349 : vector<2x128xf32>
    %351 = vector.extract_strided_slice %350 {offsets = [0, 0], sizes = [2, 32], strides = [1, 1]} : vector<2x128xf32> to vector<2x32xf32>
    %cst_59 = arith.constant 0.000000e+00 : f32
    %352 = vector.broadcast %cst_59 : f32 to vector<2x32xf32>
    %353 = arith.subf %352, %351 : vector<2x32xf32>
    %354 = math.exp %353 : vector<2x32xf32>
    %cst_60 = arith.constant 1.000000e+00 : f32
    %355 = vector.broadcast %cst_60 : f32 to vector<2x32xf32>
    %356 = arith.addf %355, %354 : vector<2x32xf32>
    %cst_61 = arith.constant 1.000000e+00 : f32
    %357 = vector.broadcast %cst_61 : f32 to vector<2x32xf32>
    %358 = arith.divf %357, %356 : vector<2x32xf32>
    %359 = vector.extract_strided_slice %350 {offsets = [0, 32], sizes = [2, 32], strides = [1, 1]} : vector<2x128xf32> to vector<2x32xf32>
    %cst_62 = arith.constant 0.000000e+00 : f32
    %360 = vector.broadcast %cst_62 : f32 to vector<2x32xf32>
    %361 = arith.subf %360, %359 : vector<2x32xf32>
    %362 = math.exp %361 : vector<2x32xf32>
    %cst_63 = arith.constant 1.000000e+00 : f32
    %363 = vector.broadcast %cst_63 : f32 to vector<2x32xf32>
    %364 = arith.addf %363, %362 : vector<2x32xf32>
    %cst_64 = arith.constant 1.000000e+00 : f32
    %365 = vector.broadcast %cst_64 : f32 to vector<2x32xf32>
    %366 = arith.divf %365, %364 : vector<2x32xf32>
    %367 = vector.extract_strided_slice %350 {offsets = [0, 64], sizes = [2, 32], strides = [1, 1]} : vector<2x128xf32> to vector<2x32xf32>
    %368 = math.tanh %367 : vector<2x32xf32>
    %369 = vector.extract_strided_slice %350 {offsets = [0, 96], sizes = [2, 32], strides = [1, 1]} : vector<2x128xf32> to vector<2x32xf32>
    %cst_65 = arith.constant 0.000000e+00 : f32
    %370 = vector.broadcast %cst_65 : f32 to vector<2x32xf32>
    %371 = arith.subf %370, %369 : vector<2x32xf32>
    %372 = math.exp %371 : vector<2x32xf32>
    %cst_66 = arith.constant 1.000000e+00 : f32
    %373 = vector.broadcast %cst_66 : f32 to vector<2x32xf32>
    %374 = arith.addf %373, %372 : vector<2x32xf32>
    %cst_67 = arith.constant 1.000000e+00 : f32
    %375 = vector.broadcast %cst_67 : f32 to vector<2x32xf32>
    %376 = arith.divf %375, %374 : vector<2x32xf32>
    %377 = arith.mulf %366, %345 : vector<2x32xf32>
    %378 = arith.mulf %358, %368 : vector<2x32xf32>
    %379 = arith.addf %377, %378 : vector<2x32xf32>
    %380 = math.tanh %379 : vector<2x32xf32>
    %381 = arith.mulf %376, %380 : vector<2x32xf32>
    %c0_68 = arith.constant 0 : index
    %c0_69 = arith.constant 0 : index
    %382 = vector.load %arg7[%c0_68, %c0_69] : memref<32x10xf32, #tpu.memory_space<vmem>>, vector<32x10xf32>
    %cst_70 = arith.constant dense<0.000000e+00> : vector<2x10xf32>
    %383 = tpu.matmul %381, %382, %cst_70 {dimension_numbers = #tpu.dot_dimension_numbers<[1], [0], [0], [1], [0, 0, 1, 1], [], []>} : vector<2x32xf32>, vector<32x10xf32>, vector<2x10xf32> -> vector<2x10xf32>
    %c0_71 = arith.constant 0 : index
    %c0_72 = arith.constant 0 : index
    %384 = vector.load %arg8[%c0_71, %c0_72] : memref<1x10xf32, #tpu.memory_space<vmem>>, vector<1x10xf32>
    %385 = vector.broadcast %384 : vector<1x10xf32> to vector<2x10xf32>
    %386 = arith.addf %383, %385 : vector<2x10xf32>
    %c0_73 = arith.constant 0 : index
    %c0_74 = arith.constant 0 : index
    %387 = vector.load %arg9[%c0_73, %c0_74] : memref<2x10xf32, #tpu.memory_space<vmem>>, vector<2x10xf32>
    tpu.vector_store %arg9[%c0_73, %c0_74], %386 {strides = array<i32>} : memref<2x10xf32, #tpu.memory_space<vmem>>, vector<2x10xf32>,
    return
  }
}

</mosaic_0001>

<llo_original>
// kernel: image_classif_lstm_forward.1
$region0: #{image_classif_lstm_forward.1}
  #allocation0 [shape = 'u32[]', space=smem, size = 0x4, offset = 0x4, fixed_abs, tag = 'smem constant byte address 0x4 - core index']
  #allocation1 [shape = 'u32[72,128]{1,0:T(1,128)}', space=vmem, size = 0x9000, scoped, tag = 'internal scratch']
  #allocation2 [shape = 'f32[1]{0:T(128)S(6)}', space=smem, size = 0x200, scoped, tag = 'scoped memory for image_classif_lstm_forward.1']
  #allocation3 [shape = 'f32[1]{0:T(128)S(6)}', space=smem, size = 0x200, scoped, tag = 'scoped memory for image_classif_lstm_forward.1']
  %s0 = inlined_call_operand.vmem [shape: f32[3,2,290], index: 0, kind: input, shape index: {}]
  %s1 = inlined_call_operand.vmem [shape: f32[27], index: 1, kind: input, shape index: {}]
  %s2 = inlined_call_operand.<no memory space> [shape: f32[1], index: 2, kind: input, shape index: {}]
  %s3 = inlined_call_operand.<no memory space> [shape: f32[1], index: 3, kind: input, shape index: {}]
  %s4 = inlined_call_operand.vmem [shape: f32[128,256], index: 4, kind: input, shape index: {}]
  %s5 = inlined_call_operand.vmem [shape: f32[1,256], index: 5, kind: input, shape index: {}]
  %s6 = inlined_call_operand.vmem [shape: f32[32,128], index: 6, kind: input, shape index: {}]
  %s7 = inlined_call_operand.vmem [shape: f32[32,10], index: 7, kind: input, shape index: {}]
  %s8 = inlined_call_operand.vmem [shape: f32[1,10], index: 8, kind: input, shape index: {}]
  %s9 = inlined_call_operand.hbm [shape: f32[2,10], index: 9, kind: output, shape index: {}]
  %s10 = sld [smem:[#allocation0]]
  $region50: #{image_classif_lstm_forward.1} parent=0
    _
  %s12 = ssub.s32 1, %s10
  %s13 = scalar_select 0, %s12, %s10
  %14 = sst [smem:[#allocation2]] %s2
  %15 = sst [smem:[#allocation3]] %s3
  $region1: #{image_classif_lstm_forward.1} parent=0
    #allocation4 [shape = 'u8[512]{0}', space=smem, size = 0x200, scoped, tag = 'input window, operand 1, single buffered']
    #allocation5 [shape = 's32[1]{0}', space=sflag, size = 0x4, scoped, tag = 'scoped memory for image_classif_lstm_forward.1']
    #allocation6 [shape = 's32[1]{0}', space=sflag, size = 0x4, scoped, tag = 'scoped memory for image_classif_lstm_forward.1']
    #allocation7 [shape = 'u8[1024]{0}', space=vmem, size = 0x400, scoped, tag = 'output window, operand 0, single buffered']
    %16 = vsyncpa [#allocation6], 0
    %17 = vsyncpa [#allocation5], 0
    // Predicated region
    $region2: #{image_classif_lstm_forward.1} parent=1 // pred_check
      _
    $region3: #{image_classif_lstm_forward.1} parent=1 // pred_check_branch
      %19 = sbr.rel (0) target = $region5
    $region4: #{image_classif_lstm_forward.1} parent=1 // pred_region
      _
    $region5: #{image_classif_lstm_forward.1} parent=1 // pred_fallthru
      _
    // Predicated region
    $region6: #{image_classif_lstm_forward.1} parent=1 // pred_check
      _
    $region7: #{image_classif_lstm_forward.1} parent=1 // pred_check_branch
      %21 = sbr.rel (0) target = $region9
    $region8: #{image_classif_lstm_forward.1} parent=1 // pred_region
      %23 = vsyncadd [#allocation6], 0
      %s25 = sshll.u32 %s1, 4
      %s26 = int_to_ptr.vmem [resolvable:$true] %s25
      %28 = dma.vmem_to_smem %s26, 16, [#allocation4], [#allocation6]
    $region9: #{image_classif_lstm_forward.1} parent=1 // pred_fallthru
      _
    // Predicated region
    $region10: #{image_classif_lstm_forward.1} parent=1 // pred_check
      _
    $region11: #{image_classif_lstm_forward.1} parent=1 // pred_check_branch
      %30 = sbr.rel (0) target = $region13
    $region12: #{image_classif_lstm_forward.1} parent=1 // pred_region
      _
    $region13: #{image_classif_lstm_forward.1} parent=1 // pred_fallthru
      _
    // Predicated region
    $region14: #{image_classif_lstm_forward.1} parent=1 // pred_check
      _
    $region15: #{image_classif_lstm_forward.1} parent=1 // pred_check_branch
      %32 = sbr.rel (0) target = $region17
    $region16: #{image_classif_lstm_forward.1} parent=1 // pred_region
      _
    $region17: #{image_classif_lstm_forward.1} parent=1 // pred_fallthru
      _
    // Predicated region
    $region18: #{image_classif_lstm_forward.1} parent=1 // pred_check
      _
    $region19: #{image_classif_lstm_forward.1} parent=1 // pred_check_branch
      %34 = sbr.rel (0) target = $region21
    $region20: #{image_classif_lstm_forward.1} parent=1 // pred_region
      _
    $region21: #{image_classif_lstm_forward.1} parent=1 // pred_fallthru
      _
    // Predicated region
    $region22: #{image_classif_lstm_forward.1} parent=1 // pred_check
      _
    $region23: #{image_classif_lstm_forward.1} parent=1 // pred_check_branch
      %36 = sbr.rel (0) target = $region25
    $region24: #{image_classif_lstm_forward.1} parent=1 // pred_region
      _
    $region25: #{image_classif_lstm_forward.1} parent=1 // pred_fallthru
      _
    // Predicated region
    $region26: #{image_classif_lstm_forward.1} parent=1 // pred_check
      _
    $region27: #{image_classif_lstm_forward.1} parent=1 // pred_check_branch
      %38 = sbr.rel (0) target = $region29
    $region28: #{image_classif_lstm_forward.1} parent=1 // pred_region
      _
    $region29: #{image_classif_lstm_forward.1} parent=1 // pred_fallthru
      _
    // Predicated region
    $region30: #{image_classif_lstm_forward.1} parent=1 // pred_check
      _
    $region31: #{image_classif_lstm_forward.1} parent=1 // pred_check_branch
      %40 = sbr.rel (0) target = $region33
    $region32: #{image_classif_lstm_forward.1} parent=1 // pred_region
      _
    $region33: #{image_classif_lstm_forward.1} parent=1 // pred_fallthru
      _
    // Predicated region
    $region34: #{image_classif_lstm_forward.1} parent=1 // pred_check
      _
    $region35: #{image_classif_lstm_forward.1} parent=1 // pred_check_branch
      %42 = sbr.rel (0) target = $region37
    $region36: #{image_classif_lstm_forward.1} parent=1 // pred_region
      _
    $region37: #{image_classif_lstm_forward.1} parent=1 // pred_fallthru
      _
    // Predicated region
    $region38: #{image_classif_lstm_forward.1} parent=1 // pred_check
      _
    $region39: #{image_classif_lstm_forward.1} parent=1 // pred_check_branch
      %44 = sbr.rel (0) target = $region41
    $region40: #{image_classif_lstm_forward.1} parent=1 // pred_region
      %46 = dma.done [#allocation6], 16
    $region41: #{image_classif_lstm_forward.1} parent=1 // pred_fallthru
      _
    %47 = sfence
    %v48 = vld [vmem:[%s0] sm:$0x3f]
    %v49 = vld [vmem:[%s0 + $0x6] sm:$0x3f]
    %v50 = vld [vmem:[%s0 + $0xc] sm:$0x3f]
    %v51 = vlaneseq
    %v52 = vand.u32 %v51, 127
    %v53 = vadd.s32 %v52, 128
    %vm54 = vcmp.lt.s32.totalorder %v52, 0
    %v55 = vsub.s32 0, %v52
    %v56 = vsel %vm54, %v55, %v52
    %v57 = vshrl.u32 %v56, 4
    %v58 = vand.u32 %v56, 15
    %v59 = vsub.s32 0, %v58
    %v60 = vsel %vm54, %v59, %v58
    %vm61 = vcmp.lt.s32.totalorder %v53, 0
    %v62 = vsub.s32 0, %v53
    %v63 = vsel %vm61, %v62, %v53
    %v64 = vshrl.u32 %v63, 4
    %v65 = vand.u32 %v63, 15
    %v66 = vsub.s32 0, %v65
    %v67 = vsel %vm61, %v66, %v65
    %vm68 = vcmp.ne.s32.totalorder %v60, 0
    %vm69 = vcmp.ne.s32.totalorder %v67, 0
    %vm70 = vcmp.lt.s32.totalorder %v60, 0
    %vm71 = vcmp.lt.s32.totalorder %v67, 0
    %vm72 = vmand %vm70, %vm68
    %vm73 = vmand %vm71, %vm69
    %v74 = vadd.s32 %v60, 16
    %v75 = vadd.s32 %v67, 16
    %v76 = vsel %vm72, %v74, %v60
    %v77 = vsel %vm73, %v75, %v67
    %s78 = sld [smem:[#allocation4]]
    %v79 = vstv %s78
    %v80 = vmul.f32 %v48, %v79
    %v81 = vadd.f32 %v80, 0.0
    %s82 = sld [smem:[#allocation4 + $0x9]]
    %v83 = vstv %s82
    %v84 = vmul.f32 %v49, %v83
    %v85 = vadd.f32 %v81, %v84
    %s86 = sld [smem:[#allocation4 + $0x12]]
    %v87 = vstv %s86
    %v88 = vmul.f32 %v50, %v87
    %v89 = vadd.f32 %v85, %v88
    %s90 = sld [smem:[#allocation4 + $0x3]]
    %v91 = vstv %s90
    %v92 = vmul.f32 %v48, %v91
    %94 = vrot.lane.b32.xlu0 %v92, 112
    %v95 = vpop.permute.xlu0 %94
    %v96 = vrot.slane %v95, 2
    %vm97 = vcmask 916480
    %v98 = vsel %vm97, %v95, %v96
    %v100 = vadd.f32 %v89, %v98
    %s101 = sld [smem:[#allocation4 + $0xc]]
    %v102 = vstv %s101
    %v103 = vmul.f32 %v49, %v102
    %105 = vrot.lane.b32.xlu0 %v103, 112
    %v106 = vpop.permute.xlu0 %105
    %v107 = vrot.slane %v106, 2
    %v108 = vsel %vm97, %v106, %v107
    %v110 = vadd.f32 %v100, %v108
    %s111 = sld [smem:[#allocation4 + $0x15]]
    %v112 = vstv %s111
    %v113 = vmul.f32 %v50, %v112
    %115 = vrot.lane.b32.xlu0 %v113, 112
    %v116 = vpop.permute.xlu0 %115
    %v117 = vrot.slane %v116, 2
    %v118 = vsel %vm97, %v116, %v117
    %v120 = vadd.f32 %v110, %v118
    %s121 = sld [smem:[#allocation4 + $0x6]]
    %v122 = vstv %s121
    %v123 = vmul.f32 %v48, %v122
    %125 = vrot.lane.b32.xlu0 %v123, 96
    %v126 = vpop.permute.xlu0 %125
    %v127 = vrot.slane %v126, 2
    %vm128 = vcmask 785408
    %v129 = vsel %vm128, %v126, %v127
    %v131 = vadd.f32 %v120, %v129
    %s132 = sld [smem:[#allocation4 + $0xf]]
    %v133 = vstv %s132
    %v134 = vmul.f32 %v49, %v133
    %136 = vrot.lane.b32.xlu0 %v134, 96
    %v137 = vpop.permute.xlu0 %136
    %v138 = vrot.slane %v137, 2
    %v139 = vsel %vm128, %v137, %v138
    %v141 = vadd.f32 %v131, %v139
    %s142 = sld [smem:[#allocation4 + $0x18]]
    %v143 = vstv %s142
    %v144 = vmul.f32 %v50, %v143
    %146 = vrot.lane.b32.xlu0 %v144, 96
    %v147 = vpop.permute.xlu0 %146
    %v148 = vrot.slane %v147, 2
    %v149 = vsel %vm128, %v147, %v148
    %v151 = vadd.f32 %v141, %v149
    %vm152 = vcmp.eq.s32.totalorder %v76, 0
    %vm153 = vcmp.eq.s32.totalorder %v77, 0
    %155 = vst [vmem:[#allocation1] ss:$4 sm:$0xff] %v151
    %v156 = vld.sshfl [vmem:[#allocation1] sm:$0xff pattern:$0x73625140]
    %v157 = vld.sshfl [vmem:[#allocation1 + $0x8] sm:$0xff pattern:$0x73625140]
    %v160 = vsel %vm152, 0.0, %v156
    %v161 = vsel %vm153, 0.0, %v157
    %v162 = vadd.f32 %v160, 0.0
    %v163 = vadd.f32 %v161, 0.0
    %s164 = sld [smem:[#allocation4 + $0x1]]
    %v165 = vstv %s164
    %v166 = vmul.f32 %v48, %v165
    %v167 = vadd.f32 %v166, 0.0
    %s168 = sld [smem:[#allocation4 + $0xa]]
    %v169 = vstv %s168
    %v170 = vmul.f32 %v49, %v169
    %v171 = vadd.f32 %v167, %v170
    %s172 = sld [smem:[#allocation4 + $0x13]]
    %v173 = vstv %s172
    %v174 = vmul.f32 %v50, %v173
    %v175 = vadd.f32 %v171, %v174
    %s176 = sld [smem:[#allocation4 + $0x4]]
    %v177 = vstv %s176
    %v178 = vmul.f32 %v48, %v177
    %180 = vrot.lane.b32.xlu0 %v178, 112
    %v181 = vpop.permute.xlu0 %180
    %v182 = vrot.slane %v181, 2
    %v183 = vsel %vm97, %v181, %v182
    %v185 = vadd.f32 %v175, %v183
    %s186 = sld [smem:[#allocation4 + $0xd]]
    %v187 = vstv %s186
    %v188 = vmul.f32 %v49, %v187
    %190 = vrot.lane.b32.xlu0 %v188, 112
    %v191 = vpop.permute.xlu0 %190
    %v192 = vrot.slane %v191, 2
    %v193 = vsel %vm97, %v191, %v192
    %v195 = vadd.f32 %v185, %v193
    %s196 = sld [smem:[#allocation4 + $0x16]]
    %v197 = vstv %s196
    %v198 = vmul.f32 %v50, %v197
    %200 = vrot.lane.b32.xlu0 %v198, 112
    %v201 = vpop.permute.xlu0 %200
    %v202 = vrot.slane %v201, 2
    %v203 = vsel %vm97, %v201, %v202
    %v205 = vadd.f32 %v195, %v203
    %s206 = sld [smem:[#allocation4 + $0x7]]
    %v207 = vstv %s206
    %v208 = vmul.f32 %v48, %v207
    %210 = vrot.lane.b32.xlu0 %v208, 96
    %v211 = vpop.permute.xlu0 %210
    %v212 = vrot.slane %v211, 2
    %v213 = vsel %vm128, %v211, %v212
    %v215 = vadd.f32 %v205, %v213
    %s216 = sld [smem:[#allocation4 + $0x10]]
    %v217 = vstv %s216
    %v218 = vmul.f32 %v49, %v217
    %220 = vrot.lane.b32.xlu0 %v218, 96
    %v221 = vpop.permute.xlu0 %220
    %v222 = vrot.slane %v221, 2
    %v223 = vsel %vm128, %v221, %v222
    %v225 = vadd.f32 %v215, %v223
    %s226 = sld [smem:[#allocation4 + $0x19]]
    %v227 = vstv %s226
    %v228 = vmul.f32 %v50, %v227
    %230 = vrot.lane.b32.xlu0 %v228, 96
    %v231 = vpop.permute.xlu0 %230
    %v232 = vrot.slane %v231, 2
    %v233 = vsel %vm128, %v231, %v232
    %v235 = vadd.f32 %v225, %v233
    %237 = vst [vmem:[#allocation1] ss:$4 sm:$0xff] %v235
    %v238 = vld.sshfl [vmem:[#allocation1] sm:$0xff pattern:$0x73625140]
    %v239 = vld.sshfl [vmem:[#allocation1 + $0x8] sm:$0xff pattern:$0x73625140]
    %v240 = vld.sshfl [vmem:[#allocation1 + $0x10] sm:$0xff pattern:$0x73625140]
    %241 = vrot.lane.b32.xlu0 %v238, 127
    %v242 = vpop.permute.xlu0 %241
    %243 = vrot.lane.b32.xlu0 %v239, 127
    %v244 = vpop.permute.xlu0 %243
    %245 = vrot.lane.b32.xlu0 %v240, 127
    %v246 = vpop.permute.xlu0 %245
    %vm247 = vcmask 1039360
    %v248 = vsel %vm247, %v242, %v244
    %v249 = vsel %vm247, %v244, %v246
    %v252 = vadd.f32 %v162, %v248
    %v253 = vadd.f32 %v163, %v249
    %s254 = sld [smem:[#allocation4 + $0x2]]
    %v255 = vstv %s254
    %v256 = vmul.f32 %v48, %v255
    %v257 = vadd.f32 %v256, 0.0
    %s258 = sld [smem:[#allocation4 + $0xb]]
    %v259 = vstv %s258
    %v260 = vmul.f32 %v49, %v259
    %v261 = vadd.f32 %v257, %v260
    %s262 = sld [smem:[#allocation4 + $0x14]]
    %v263 = vstv %s262
    %v264 = vmul.f32 %v50, %v263
    %v265 = vadd.f32 %v261, %v264
    %s266 = sld [smem:[#allocation4 + $0x5]]
    %v267 = vstv %s266
    %v268 = vmul.f32 %v48, %v267
    %270 = vrot.lane.b32.xlu0 %v268, 112
    %v271 = vpop.permute.xlu0 %270
    %v272 = vrot.slane %v271, 2
    %v273 = vsel %vm97, %v271, %v272
    %v275 = vadd.f32 %v265, %v273
    %s276 = sld [smem:[#allocation4 + $0xe]]
    %v277 = vstv %s276
    %v278 = vmul.f32 %v49, %v277
    %280 = vrot.lane.b32.xlu0 %v278, 112
    %v281 = vpop.permute.xlu0 %280
    %v282 = vrot.slane %v281, 2
    %v283 = vsel %vm97, %v281, %v282
    %v285 = vadd.f32 %v275, %v283
    %s286 = sld [smem:[#allocation4 + $0x17]]
    %v287 = vstv %s286
    %v288 = vmul.f32 %v50, %v287
    %290 = vrot.lane.b32.xlu0 %v288, 112
    %v291 = vpop.permute.xlu0 %290
    %v292 = vrot.slane %v291, 2
    %v293 = vsel %vm97, %v291, %v292
    %v295 = vadd.f32 %v285, %v293
    %s296 = sld [smem:[#allocation4 + $0x8]]
    %v297 = vstv %s296
    %v298 = vmul.f32 %v48, %v297
    %300 = vrot.lane.b32.xlu0 %v298, 96
    %v301 = vpop.permute.xlu0 %300
    %v302 = vrot.slane %v301, 2
    %v303 = vsel %vm128, %v301, %v302
    %v305 = vadd.f32 %v295, %v303
    %s306 = sld [smem:[#allocation4 + $0x11]]
    %v307 = vstv %s306
    %v308 = vmul.f32 %v49, %v307
    %310 = vrot.lane.b32.xlu0 %v308, 96
    %v311 = vpop.permute.xlu0 %310
    %v312 = vrot.slane %v311, 2
    %v313 = vsel %vm128, %v311, %v312
    %v315 = vadd.f32 %v305, %v313
    %s316 = sld [smem:[#allocation4 + $0x1a]]
    %v317 = vstv %s316
    %v318 = vmul.f32 %v50, %v317
    %320 = vrot.lane.b32.xlu0 %v318, 96
    %v321 = vpop.permute.xlu0 %320
    %v322 = vrot.slane %v321, 2
    %v323 = vsel %vm128, %v321, %v322
    %v325 = vadd.f32 %v315, %v323
    %vm326 = vcmp.eq.s32.totalorder %v76, 15
    %vm327 = vcmp.eq.s32.totalorder %v77, 15
    %329 = vst [vmem:[#allocation1] ss:$4 sm:$0xff] %v325
    %v330 = vld.sshfl [vmem:[#allocation1] sm:$0xff pattern:$0x73625140]
    %v331 = vld.sshfl [vmem:[#allocation1 + $0x8] sm:$0xff pattern:$0x73625140]
    %v332 = vld.sshfl [vmem:[#allocation1 + $0x10] sm:$0xff pattern:$0x73625140]
    %333 = vrot.lane.b32.xlu0 %v330, 126
    %v334 = vpop.permute.xlu0 %333
    %335 = vrot.lane.b32.xlu0 %v331, 126
    %v336 = vpop.permute.xlu0 %335
    %337 = vrot.lane.b32.xlu0 %v332, 126
    %v338 = vpop.permute.xlu0 %337
    %vm339 = vcmask 1031168
    %v340 = vsel %vm339, %v334, %v336
    %v341 = vsel %vm339, %v336, %v338
    %v344 = vsel %vm326, 0.0, %v340
    %v345 = vsel %vm327, 0.0, %v341
    %v346 = vadd.f32 %v252, %v344
    %v347 = vadd.f32 %v253, %v345
    %vm348 = vcmask 1041408
    %v349 = vsel %vm348, %v346, 0.0
    %v350 = vsel %vm348, %v347, 0.0
    %v351 = vadd.f32 %v349, %v350
    %352 = vadd.xlane.f32.xlu0 %v351
    %v353 = vpop.xlane.xlu0 %352
    %v354 = vrot.slane %v353, 4
    %v355 = vadd.f32 %v353, %v354
    %v356 = vrot.slane %v355, 2
    %v357 = vadd.f32 %v355, %v356
    %v358 = vrot.slane %v357, 1
    %v359 = vadd.f32 %v357, %v358
    %s360 = vtos %v359
    %v361 = vstv %s360
    %v362 = vmul.f32 %v346, %v346
    %v363 = vmul.f32 %v347, %v347
    %v364 = vsel %vm348, %v362, 0.0
    %v365 = vsel %vm348, %v363, 0.0
    %v366 = vadd.f32 %v364, %v365
    %367 = vadd.xlane.f32.xlu0 %v366
    %v368 = vpop.xlane.xlu0 %367
    %v369 = vrot.slane %v368, 4
    %v370 = vadd.f32 %v368, %v369
    %v371 = vrot.slane %v370, 2
    %v372 = vadd.f32 %v370, %v371
    %v373 = vrot.slane %v372, 1
    %v374 = vadd.f32 %v372, %v373
    %s375 = vtos %v374
    %v376 = vstv %s375
    %v377 = vrcp.pop 512.0
    %v378 = vmul.f32 512.0, %v377
    %v379 = vsub.f32 1.0, %v378
    %v380 = vmul.f32 %v377, %v379
    %v381 = vadd.f32 %v377, %v380
    %vm382 = vweird.f32 %v377
    %v383 = vsel %vm382, %v377, %v381
    %v384 = vmul.f32 %v361, %v383
    %v385 = vmul.f32 %v376, %v383
    %v386 = vmul.f32 %v384, %v384
    %v387 = vsub.f32 %v385, %v386
    %v388 = vadd.f32 %v387, 1e-05
    %v389 = vrsqrt.pop %v388
    %v390 = vmul.f32 %v389, %v388
    %v391 = vmul.f32 %v390, %v389
    %v392 = vmul.f32 0.5, %v391
    %v393 = vsub.f32 1.5, %v392
    %v394 = vmul.f32 %v389, %v393
    %vm395 = vweird.f32 %v388
    %vm396 = vweird.f32 %v389
    %vm397 = vmor %vm395, %vm396
    %v398 = vsel %vm397, %v389, %v394
    %s399 = sld [smem:[#allocation2]]
    %v400 = vstv %s399
    %v401 = vmul.f32 %v398, %v400
    %v402 = vsub.f32 %v346, %v384
    %v403 = vsub.f32 %v347, %v384
    %v404 = vmul.f32 %v402, %v401
    %v405 = vmul.f32 %v403, %v401
    %s406 = sld [smem:[#allocation3]]
    %v407 = vstv %s406
    %v408 = vadd.f32 %v404, %v407
    %v409 = vadd.f32 %v405, %v407
    %v410 = vmax.f32 %v408, 0.0
    %v411 = vmax.f32 %v409, 0.0
    %v412 = vld [vmem:[%s4] sm:$0xff]
    %v413 = vld [vmem:[%s4 + $0x8] sm:$0xff]
    %v414 = vld [vmem:[%s4 + $0x10] sm:$0xff]
    %v415 = vld [vmem:[%s4 + $0x18] sm:$0xff]
    %v416 = vld [vmem:[%s4 + $0x20] sm:$0xff]
    %v417 = vld [vmem:[%s4 + $0x28] sm:$0xff]
    %v418 = vld [vmem:[%s4 + $0x30] sm:$0xff]
    %v419 = vld [vmem:[%s4 + $0x38] sm:$0xff]
    %v420 = vld [vmem:[%s4 + $0x40] sm:$0xff]
    %v421 = vld [vmem:[%s4 + $0x48] sm:$0xff]
    %v422 = vld [vmem:[%s4 + $0x50] sm:$0xff]
    %v423 = vld [vmem:[%s4 + $0x58] sm:$0xff]
    %v424 = vld [vmem:[%s4 + $0x60] sm:$0xff]
    %v425 = vld [vmem:[%s4 + $0x68] sm:$0xff]
    %v426 = vld [vmem:[%s4 + $0x70] sm:$0xff]
    %v427 = vld [vmem:[%s4 + $0x78] sm:$0xff]
    %v428 = vld [vmem:[%s4 + $0x80] sm:$0xff]
    %v429 = vld [vmem:[%s4 + $0x88] sm:$0xff]
    %v430 = vld [vmem:[%s4 + $0x90] sm:$0xff]
    %v431 = vld [vmem:[%s4 + $0x98] sm:$0xff]
    %v432 = vld [vmem:[%s4 + $0xa0] sm:$0xff]
    %v433 = vld [vmem:[%s4 + $0xa8] sm:$0xff]
    %v434 = vld [vmem:[%s4 + $0xb0] sm:$0xff]
    %v435 = vld [vmem:[%s4 + $0xb8] sm:$0xff]
    %v436 = vld [vmem:[%s4 + $0xc0] sm:$0xff]
    %v437 = vld [vmem:[%s4 + $0xc8] sm:$0xff]
    %v438 = vld [vmem:[%s4 + $0xd0] sm:$0xff]
    %v439 = vld [vmem:[%s4 + $0xd8] sm:$0xff]
    %v440 = vld [vmem:[%s4 + $0xe0] sm:$0xff]
    %v441 = vld [vmem:[%s4 + $0xe8] sm:$0xff]
    %v442 = vld [vmem:[%s4 + $0xf0] sm:$0xff]
    %v443 = vld [vmem:[%s4 + $0xf8] sm:$0xff]
    %v444 = vld [vmem:[%s5] sm:$0x3]
    %v446 = vperm.slane %v444, 0
    %v447 = vperm.slane %v444, 1
    %450 = vmatpush.msra.mxu0 %v442
    %451 = vmatpush.msra.mxu0 %v440
    %452 = vmatpush.msra.mxu0 %v438
    %453 = vmatpush.msra.mxu0 %v436
    %454 = vmatpush.msra.mxu0 %v434
    %455 = vmatpush.msra.mxu0 %v432
    %456 = vmatpush.msra.mxu0 %v430
    %457 = vmatpush.msra.mxu0 %v428
    %458 = vmatpush.msra.mxu0 %v426
    %459 = vmatpush.msra.mxu0 %v424
    %460 = vmatpush.msra.mxu0 %v422
    %461 = vmatpush.msra.mxu0 %v420
    %462 = vmatpush.msra.mxu0 %v418
    %463 = vmatpush.msra.mxu0 %v416
    %464 = vmatpush.msra.mxu0 %v414
    %465 = vmatpush.msra.mxu0 %v412
    %466 = vmatmul.f32.gmra.mxu0 %v410
    %v467 = vpop.f32.mrf.mxu0
    %v468 = vadd.f32 %v446, %v467
    %469 = vdwg.mxu0
    %470 = vmatpush.msra.mxu0 %v443
    %471 = vmatpush.msra.mxu0 %v441
    %472 = vmatpush.msra.mxu0 %v439
    %473 = vmatpush.msra.mxu0 %v437
    %474 = vmatpush.msra.mxu0 %v435
    %475 = vmatpush.msra.mxu0 %v433
    %476 = vmatpush.msra.mxu0 %v431
    %477 = vmatpush.msra.mxu0 %v429
    %478 = vmatpush.msra.mxu0 %v427
    %479 = vmatpush.msra.mxu0 %v425
    %480 = vmatpush.msra.mxu0 %v423
    %481 = vmatpush.msra.mxu0 %v421
    %482 = vmatpush.msra.mxu0 %v419
    %483 = vmatpush.msra.mxu0 %v417
    %484 = vmatpush.msra.mxu0 %v415
    %485 = vmatpush.msra.mxu0 %v413
    %486 = vmatmul.f32.gmra.mxu0 %v410
    %v487 = vpop.f32.mrf.mxu0
    %v488 = vadd.f32 %v447, %v487
    %489 = vdwg.mxu0
    %490 = vmatpush.msra.mxu0 %v442
    %491 = vmatpush.msra.mxu0 %v440
    %492 = vmatpush.msra.mxu0 %v438
    %493 = vmatpush.msra.mxu0 %v436
    %494 = vmatpush.msra.mxu0 %v434
    %495 = vmatpush.msra.mxu0 %v432
    %496 = vmatpush.msra.mxu0 %v430
    %497 = vmatpush.msra.mxu0 %v428
    %498 = vmatpush.msra.mxu0 %v426
    %499 = vmatpush.msra.mxu0 %v424
    %500 = vmatpush.msra.mxu0 %v422
    %501 = vmatpush.msra.mxu0 %v420
    %502 = vmatpush.msra.mxu0 %v418
    %503 = vmatpush.msra.mxu0 %v416
    %504 = vmatpush.msra.mxu0 %v414
    %505 = vmatpush.msra.mxu0 %v412
    %506 = vmatmul.f32.gmra.mxu0 %v411
    %v507 = vpop.f32.mrf.mxu0
    %v508 = vadd.f32 %v446, %v507
    %509 = vdwg.mxu0
    %510 = vmatpush.msra.mxu0 %v443
    %511 = vmatpush.msra.mxu0 %v441
    %512 = vmatpush.msra.mxu0 %v439
    %513 = vmatpush.msra.mxu0 %v437
    %514 = vmatpush.msra.mxu0 %v435
    %515 = vmatpush.msra.mxu0 %v433
    %516 = vmatpush.msra.mxu0 %v431
    %517 = vmatpush.msra.mxu0 %v429
    %518 = vmatpush.msra.mxu0 %v427
    %519 = vmatpush.msra.mxu0 %v425
    %520 = vmatpush.msra.mxu0 %v423
    %521 = vmatpush.msra.mxu0 %v421
    %522 = vmatpush.msra.mxu0 %v419
    %523 = vmatpush.msra.mxu0 %v417
    %524 = vmatpush.msra.mxu0 %v415
    %525 = vmatpush.msra.mxu0 %v413
    %526 = vmatmul.f32.gmra.mxu0 %v411
    %v527 = vpop.f32.mrf.mxu0
    %v528 = vadd.f32 %v447, %v527
    %529 = vdwg.mxu0
    %v530 = vld [vmem:[%s6] sm:$0xff]
    %v531 = vld [vmem:[%s6 + $0x8] sm:$0xff]
    %v532 = vld [vmem:[%s6 + $0x10] sm:$0xff]
    %v533 = vld [vmem:[%s6 + $0x18] sm:$0xff]
    %v534 = vsub.f32 0.0, %v468
    %v535 = vmul.f32 %v534, 1.442695
    %v536 = vpow.pop %v535
    %v537 = vadd.f32 %v536, 1.0
    %v538 = vrcp.pop %v537
    %v539 = vmul.f32 %v537, %v538
    %v540 = vsub.f32 1.0, %v539
    %v541 = vmul.f32 %v538, %v540
    %v542 = vadd.f32 %v538, %v541
    %vm543 = vweird.f32 %v537
    %vm544 = vweird.f32 %v538
    %vm545 = vmor %vm543, %vm544
    %v546 = vsel %vm545, %v538, %v542
    %v547 = vand.u32 2147483647, %v537
    %vm548 = vcmp.eq.f32.partialorder %v547, 8.507059e+37
    %v549 = vand.u32 %v537, 2147483648
    %v550 = vor.u32 1.1754944e-38, %v549
    %v551 = vsel %vm548, %v550, %v546
    %v552 = vmul.f32 1.0, %v551
    %v553 = vtanh.pop %v468
    %v554 = vmul.f32 %v552, 0.0
    %556 = vrot.lane.b32.xlu0 %v553, 64
    %v557 = vpop.permute.xlu0 %556
    %v559 = vmul.f32 %v552, %v557
    %561 = vrot.lane.b32.xlu0 %v559, 32
    %v562 = vpop.permute.xlu0 %561
    %v564 = vadd.f32 %v554, %v562
    %v565 = vtanh.pop %v564
    %567 = vrot.lane.b32.xlu0 %v565, 64
    %v568 = vpop.permute.xlu0 %567
    %v570 = vmul.f32 %v552, %v568
    %572 = vrot.lane.b32.xlu0 %v570, 32
    %v573 = vpop.permute.xlu0 %572
    %vm574 = vcmask 261120
    %v575 = vsel %vm574, %v573, 0
    %577 = vmatpush.msra.mxu0 0.0
    %578 = vmatpush.msra.mxu0 0.0
    %579 = vmatpush.msra.mxu0 0.0
    %580 = vmatpush.msra.mxu0 0.0
    %581 = vmatpush.msra.mxu0 0.0
    %582 = vmatpush.msra.mxu0 0.0
    %583 = vmatpush.msra.mxu0 0.0
    %584 = vmatpush.msra.mxu0 0.0
    %585 = vmatpush.msra.mxu0 0.0
    %586 = vmatpush.msra.mxu0 0.0
    %587 = vmatpush.msra.mxu0 0.0
    %588 = vmatpush.msra.mxu0 0.0
    %589 = vmatpush.msra.mxu0 %v533
    %590 = vmatpush.msra.mxu0 %v532
    %591 = vmatpush.msra.mxu0 %v531
    %592 = vmatpush.msra.mxu0 %v530
    %593 = vmatmul.f32.gmra.mxu0 %v575
    %v594 = vpop.f32.mrf.mxu0
    %v595 = vadd.f32 0.0, %v594
    %596 = vdwg.mxu0
    %v597 = vadd.f32 %v488, %v595
    %v598 = vsub.f32 0.0, %v597
    %v599 = vmul.f32 %v598, 1.442695
    %v600 = vpow.pop %v599
    %v601 = vadd.f32 %v600, 1.0
    %v602 = vrcp.pop %v601
    %v603 = vmul.f32 %v601, %v602
    %v604 = vsub.f32 1.0, %v603
    %v605 = vmul.f32 %v602, %v604
    %v606 = vadd.f32 %v602, %v605
    %vm607 = vweird.f32 %v601
    %vm608 = vweird.f32 %v602
    %vm609 = vmor %vm607, %vm608
    %v610 = vsel %vm609, %v602, %v606
    %v611 = vand.u32 2147483647, %v601
    %vm612 = vcmp.eq.f32.partialorder %v611, 8.507059e+37
    %v613 = vand.u32 %v601, 2147483648
    %v614 = vor.u32 1.1754944e-38, %v613
    %v615 = vsel %vm612, %v614, %v610
    %v616 = vmul.f32 1.0, %v615
    %v617 = vtanh.pop %v597
    %v618 = vmul.f32 %v616, %v564
    %620 = vrot.lane.b32.xlu0 %v617, 64
    %v621 = vpop.permute.xlu0 %620
    %v623 = vmul.f32 %v616, %v621
    %625 = vrot.lane.b32.xlu0 %v623, 32
    %v626 = vpop.permute.xlu0 %625
    %v628 = vadd.f32 %v618, %v626
    %v629 = vtanh.pop %v628
    %631 = vrot.lane.b32.xlu0 %v629, 64
    %v632 = vpop.permute.xlu0 %631
    %v634 = vmul.f32 %v616, %v632
    %636 = vrot.lane.b32.xlu0 %v634, 32
    %v637 = vpop.permute.xlu0 %636
    %v638 = vsel %vm574, %v637, 0
    %640 = vmatpush.msra.mxu0 0.0
    %641 = vmatpush.msra.mxu0 0.0
    %642 = vmatpush.msra.mxu0 0.0
    %643 = vmatpush.msra.mxu0 0.0
    %644 = vmatpush.msra.mxu0 0.0
    %645 = vmatpush.msra.mxu0 0.0
    %646 = vmatpush.msra.mxu0 0.0
    %647 = vmatpush.msra.mxu0 0.0
    %648 = vmatpush.msra.mxu0 0.0
    %649 = vmatpush.msra.mxu0 0.0
    %650 = vmatpush.msra.mxu0 0.0
    %651 = vmatpush.msra.mxu0 0.0
    %652 = vmatpush.msra.mxu0 %v533
    %653 = vmatpush.msra.mxu0 %v532
    %654 = vmatpush.msra.mxu0 %v531
    %655 = vmatpush.msra.mxu0 %v530
    %656 = vmatmul.f32.gmra.mxu0 %v638
    %v657 = vpop.f32.mrf.mxu0
    %v658 = vadd.f32 0.0, %v657
    %659 = vdwg.mxu0
    %v660 = vadd.f32 %v508, %v658
    %v661 = vsub.f32 0.0, %v660
    %v662 = vmul.f32 %v661, 1.442695
    %v663 = vpow.pop %v662
    %v664 = vadd.f32 %v663, 1.0
    %v665 = vrcp.pop %v664
    %v666 = vmul.f32 %v664, %v665
    %v667 = vsub.f32 1.0, %v666
    %v668 = vmul.f32 %v665, %v667
    %v669 = vadd.f32 %v665, %v668
    %vm670 = vweird.f32 %v664
    %vm671 = vweird.f32 %v665
    %vm672 = vmor %vm670, %vm671
    %v673 = vsel %vm672, %v665, %v669
    %v674 = vand.u32 2147483647, %v664
    %vm675 = vcmp.eq.f32.partialorder %v674, 8.507059e+37
    %v676 = vand.u32 %v664, 2147483648
    %v677 = vor.u32 1.1754944e-38, %v676
    %v678 = vsel %vm675, %v677, %v673
    %v679 = vmul.f32 1.0, %v678
    %v680 = vtanh.pop %v660
    %v681 = vmul.f32 %v679, %v628
    %683 = vrot.lane.b32.xlu0 %v680, 64
    %v684 = vpop.permute.xlu0 %683
    %v686 = vmul.f32 %v679, %v684
    %688 = vrot.lane.b32.xlu0 %v686, 32
    %v689 = vpop.permute.xlu0 %688
    %v691 = vadd.f32 %v681, %v689
    %v692 = vtanh.pop %v691
    %694 = vrot.lane.b32.xlu0 %v692, 64
    %v695 = vpop.permute.xlu0 %694
    %v697 = vmul.f32 %v679, %v695
    %699 = vrot.lane.b32.xlu0 %v697, 32
    %v700 = vpop.permute.xlu0 %699
    %v701 = vsel %vm574, %v700, 0
    %703 = vmatpush.msra.mxu0 0.0
    %704 = vmatpush.msra.mxu0 0.0
    %705 = vmatpush.msra.mxu0 0.0
    %706 = vmatpush.msra.mxu0 0.0
    %707 = vmatpush.msra.mxu0 0.0
    %708 = vmatpush.msra.mxu0 0.0
    %709 = vmatpush.msra.mxu0 0.0
    %710 = vmatpush.msra.mxu0 0.0
    %711 = vmatpush.msra.mxu0 0.0
    %712 = vmatpush.msra.mxu0 0.0
    %713 = vmatpush.msra.mxu0 0.0
    %714 = vmatpush.msra.mxu0 0.0
    %715 = vmatpush.msra.mxu0 %v533
    %716 = vmatpush.msra.mxu0 %v532
    %717 = vmatpush.msra.mxu0 %v531
    %718 = vmatpush.msra.mxu0 %v530
    %719 = vmatmul.f32.gmra.mxu0 %v701
    %v720 = vpop.f32.mrf.mxu0
    %v721 = vadd.f32 0.0, %v720
    %722 = vdwg.mxu0
    %v723 = vadd.f32 %v528, %v721
    %v724 = vsub.f32 0.0, %v723
    %v725 = vmul.f32 %v724, 1.442695
    %v726 = vpow.pop %v725
    %v727 = vadd.f32 %v726, 1.0
    %v728 = vrcp.pop %v727
    %v729 = vmul.f32 %v727, %v728
    %v730 = vsub.f32 1.0, %v729
    %v731 = vmul.f32 %v728, %v730
    %v732 = vadd.f32 %v728, %v731
    %vm733 = vweird.f32 %v727
    %vm734 = vweird.f32 %v728
    %vm735 = vmor %vm733, %vm734
    %v736 = vsel %vm735, %v728, %v732
    %v737 = vand.u32 2147483647, %v727
    %vm738 = vcmp.eq.f32.partialorder %v737, 8.507059e+37
    %v739 = vand.u32 %v727, 2147483648
    %v740 = vor.u32 1.1754944e-38, %v739
    %v741 = vsel %vm738, %v740, %v736
    %v742 = vmul.f32 1.0, %v741
    %v743 = vtanh.pop %v723
    %v744 = vmul.f32 %v742, %v691
    %746 = vrot.lane.b32.xlu0 %v743, 64
    %v747 = vpop.permute.xlu0 %746
    %v749 = vmul.f32 %v742, %v747
    %751 = vrot.lane.b32.xlu0 %v749, 32
    %v752 = vpop.permute.xlu0 %751
    %v754 = vadd.f32 %v744, %v752
    %v755 = vtanh.pop %v754
    %757 = vrot.lane.b32.xlu0 %v755, 64
    %v758 = vpop.permute.xlu0 %757
    %v760 = vmul.f32 %v742, %v758
    %v761 = vld [vmem:[%s7] sm:$0xff]
    %v762 = vld [vmem:[%s7 + $0x8] sm:$0xff]
    %v763 = vld [vmem:[%s7 + $0x10] sm:$0xff]
    %v764 = vld [vmem:[%s7 + $0x18] sm:$0xff]
    %v765 = vld [vmem:[%s8] sm:$0x1]
    %v767 = vperm.slane %v765, 0
    %770 = vrot.lane.b32.xlu0 %v760, 32
    %v771 = vpop.permute.xlu0 %770
    %v772 = vsel %vm574, %v771, 0
    %774 = vmatpush.msra.mxu0 0.0
    %775 = vmatpush.msra.mxu0 0.0
    %776 = vmatpush.msra.mxu0 0.0
    %777 = vmatpush.msra.mxu0 0.0
    %778 = vmatpush.msra.mxu0 0.0
    %779 = vmatpush.msra.mxu0 0.0
    %780 = vmatpush.msra.mxu0 0.0
    %781 = vmatpush.msra.mxu0 0.0
    %782 = vmatpush.msra.mxu0 0.0
    %783 = vmatpush.msra.mxu0 0.0
    %784 = vmatpush.msra.mxu0 0.0
    %785 = vmatpush.msra.mxu0 0.0
    %786 = vmatpush.msra.mxu0 %v764
    %787 = vmatpush.msra.mxu0 %v763
    %788 = vmatpush.msra.mxu0 %v762
    %789 = vmatpush.msra.mxu0 %v761
    %790 = vmatmul.f32.gmra.mxu0 %v772
    %v791 = vpop.f32.mrf.mxu0
    %v792 = vadd.f32 %v767, %v791
    %793 = vdwg.mxu0
    %vm794 = vcmask 74752
    %795 = vst.msk [vmem:[#allocation7] sm:$0x3] %vm794, %v792
    // Predicated region
    $region42: #{image_classif_lstm_forward.1} parent=1 // pred_check
      _
    $region43: #{image_classif_lstm_forward.1} parent=1 // pred_check_branch
      %797 = sbr.rel (0) target = $region45
    $region44: #{image_classif_lstm_forward.1} parent=1 // pred_region
      %799 = vsyncadd [#allocation5], 0
      %s801 = sshll.u32 [#allocation7], 4
      %s802 = int_to_ptr.vmem [resolvable:$true] %s801
      %s803 = sshll.u32 %s9, 4
      %s804 = int_to_ptr.hbm [resolvable:$true] %s803
      %806 = dma.vmem_to_hbm [thread:$0]  %s802, 32, %s804, [#allocation5]
    $region45: #{image_classif_lstm_forward.1} parent=1 // pred_fallthru
      _
    // Predicated region
    $region46: #{image_classif_lstm_forward.1} parent=1 // pred_check
      _
    $region47: #{image_classif_lstm_forward.1} parent=1 // pred_check_branch
      %808 = sbr.rel (0) target = $region49
    $region48: #{image_classif_lstm_forward.1} parent=1 // pred_region
      %810 = dma.done [#allocation5], 32
    $region49: #{image_classif_lstm_forward.1} parent=1 // pred_fallthru
      _
    %811 = vsyncpa [#allocation5], 1
    %812 = vsyncpa [#allocation6], 1

</llo_original>
